<compile_context>
chip_gen: v7x
topology: tpu7x:2x2x1
jax: 0.10.0
libtpu: 0.0.40
codegen_flags: <defaults>
</compile_context>

<pallas_src>
import functools

import jax
import jax.numpy as jnp
from jax import lax
from jax.experimental import pallas as pl
from jax.experimental.pallas import tpu as pltpu

# ---------------- problem sizes (small, consistent with the module) -----------
B = 4            # batch of query users
NUM_FIELDS = 4   # num_fields
K = 8            # COLD_USER_THRESHOLD (number of support samples per user)
EMB = 8          # embedding dim of encoder/predictor
HID = 32         # encoder hidden dim (g_x feature dim)
VOCAB = 50
DP1 = HID + 1    # ridge-regression feature dim (hidden + bias column)


# ------------------------------ Pallas kernel ---------------------------------
def resus_rr_kernel(lam_ref, xa_ref, yrr_ref, aux_ref, out_ref):
    """Single invocation: batched ridge regression + prediction for all users."""
    Xa = xa_ref[...]            # (B, K+1, DP1); rows 0..K-1 = masked support, row K = gxa
    yrr = yrr_ref[...]          # (B, K, 1)  residual targets
    lam = lam_ref[0]            # scalar |lambda| from SMEM

    b, kp1, _ = Xa.shape
    k = kp1 - 1

    # One batched Gram matmul:  G = Xa Xa^T.
    #   A = G[:, :k, :k] = X X^T        v = G[:, :k, k] = X @ gxa^T
    G = jnp.einsum("bid,bjd->bij", Xa, Xa, preferred_element_type=jnp.float32)
    v = G[:, :k, k:k + 1]                                   # (B, K, 1)

    # Identity built once (trace-time); reused for lam*I and pivot-row restore.
    ri = lax.broadcasted_iota(jnp.int32, (k, k), 0)
    ci = lax.broadcasted_iota(jnp.int32, (k, k), 1)
    eye = (ri == ci).astype(jnp.float32)                    # (K, K)

    A = G[:, :k, :k] + lam * eye                            # (B, K, K), SPD
    y = yrr

    # Unrolled Gauss-Jordan elimination over the K support samples, all B users
    # at once.  The loop index is a Python constant, so every slice is static.
    for i in range(k):
        piv = A[:, i:i + 1, i:i + 1]                        # (B,1,1)
        r = pl.reciprocal(piv, approx=True)                 # EUP slot
        r = r * (2.0 - piv * r)                             # one Newton step -> f32-exact
        row_i = A[:, i:i + 1, :] * r                        # (B,1,K) normalized pivot row
        y_i = y[:, i:i + 1, :] * r                          # (B,1,1)
        factor = A[:, :, i:i + 1] - eye[:, i:i + 1]         # (B,K,1); at row i -> piv-1
        A = A - factor * row_i                              # eliminate col i, row i -> row_i
        y = y - factor * y_i

    s = y                                                   # (B,K,1) = (X X^T + lam I)^-1 yrr

    # out = gxa . (X^T s) = v . s
    out = jnp.sum(v * s, axis=1, keepdims=True)             # (B,1,1)

    aux = aux_ref[...]                                      # (B,1,3) = [|scale|, bias, y0]
    sc = aux[:, :, 0:1]
    bi = aux[:, :, 1:2]
    y0 = aux[:, :, 2:3]
    out_ref[...] = out * sc + bi + y0                       # adjust(...) + predictor[:, [0]]


def resus_rr_pallas(lam, Xa, yrr, aux):
    b = Xa.shape[0]
    return pl.pallas_call(
        resus_rr_kernel,
        out_shape=jax.ShapeDtypeStruct((b, 1, 1), jnp.float32),
        in_specs=[
            pl.BlockSpec(memory_space=pltpu.MemorySpace.SMEM),   # lam (1,)
            pl.BlockSpec(memory_space=pltpu.MemorySpace.VMEM),   # Xa  (B, K+1, DP1)
            pl.BlockSpec(memory_space=pltpu.MemorySpace.VMEM),   # yrr (B, K, 1)
            pl.BlockSpec(memory_space=pltpu.MemorySpace.VMEM),   # aux (B, 1, 3)
        ],
        out_specs=pl.BlockSpec(memory_space=pltpu.MemorySpace.VMEM),
    )(lam, Xa, yrr, aux)


# --------------------- encoder / predictor (plain-JAX glue) -------------------
def make_params(key):
    ks = jax.random.split(key, 6)
    p = {
        "E_pred": 0.1 * jax.random.normal(ks[0], (VOCAB, EMB), jnp.float32),
        "w_pred": 0.1 * jax.random.normal(ks[1], (NUM_FIELDS * EMB, 1), jnp.float32),
        "b_pred": jnp.zeros((), jnp.float32),
        "E_enc": 0.1 * jax.random.normal(ks[2], (VOCAB, EMB), jnp.float32),
        "W_enc": 0.1 * jax.random.normal(ks[3], (NUM_FIELDS * EMB, HID), jnp.float32),
        "b_enc": jnp.zeros((HID,), jnp.float32),
        # module __init__ values:
        "lambda_rr": jnp.array([1.0], jnp.float32),            # LambdaLayer(init_lambda=1)
        "adj_scale": jnp.ones((K, 1), jnp.float32),            # AdjustLayer(init_scale=1)
        "adj_bias": jnp.zeros((K, 1), jnp.float32),            # init_bias=0
    }
    return p


def predictor(params, ids, vals):
    emb = params["E_pred"][ids] * vals[..., None]              # (N, F, EMB)
    h = emb.reshape(emb.shape[0], -1)
    return (h @ params["w_pred"]).squeeze(-1) + params["b_pred"]   # (N,)


def encoder(params, ids, vals):
    emb = params["E_enc"][ids] * vals[..., None]               # (N, F, EMB)
    h = emb.reshape(emb.shape[0], -1)
    hidden = jnp.maximum(h @ params["W_enc"] + params["b_enc"], 0.0)  # (N, HID)
    return None, hidden


# ----------------------------- full forward -----------------------------------
@functools.partial(jax.jit, static_argnames=("use_pallas",))
def resus_rr_forward(params, feature_ids, feature_vals, support_data,
                     use_pallas=True):
    x_id_s, x_val_s, y_s = support_data
    b = feature_ids.shape[0]

    ids_cat = jnp.concatenate([feature_ids[:, None, :], x_id_s], axis=1)
    vals_cat = jnp.concatenate([feature_vals[:, None, :], x_val_s], axis=1)
    ids_cat = ids_cat.reshape(-1, NUM_FIELDS)
    vals_cat = vals_cat.reshape(-1, NUM_FIELDS)

    out_pred = predictor(params, ids_cat, vals_cat).reshape(-1, K + 1)  # (B, K+1)
    _, g = encoder(params, ids_cat, vals_cat)
    g = g.reshape(-1, K + 1, g.shape[1])                                # (B, K+1, HID)

    g_hat = g[:, 0, :]                                                  # (B, HID)
    g_sup = g[:, 1:, :]                                                 # (B, K, HID)
    y0 = out_pred[:, 0]                                                 # (B,)

    X_mask = (y_s != -1).astype(jnp.float32)[..., None]                 # (B, K, 1)
    num_samples = jnp.sum((y_s != -1).astype(jnp.int32), axis=1)        # (B,)

    ones_col = jnp.ones((b, K, 1), jnp.float32)
    X = jnp.concatenate([g_sup, ones_col], axis=2) * X_mask             # (B, K, DP1)

    yrr = y_s[..., None] - jax.nn.sigmoid(out_pred[:, 1:, None])        # (B, K, 1)

    sc = jnp.abs(params["adj_scale"][num_samples - 1])                  # (B, 1)
    bi = params["adj_bias"][num_samples - 1]                            # (B, 1)
    lam = jnp.abs(params["lambda_rr"]).reshape(1)                       # (1,)

    gxa = jnp.concatenate([g_hat, jnp.ones((b, 1), jnp.float32)],
                          axis=1)[:, None, :]                           # (B, 1, DP1)

    if use_pallas:
        Xa = jnp.concatenate([X, gxa], axis=1)                          # (B, K+1, DP1)
        aux = jnp.concatenate([sc, bi, y0[:, None]], axis=1)[:, None, :]  # (B, 1, 3)
        pred = resus_rr_pallas(lam, Xa, yrr, aux)
        return pred.reshape(b)                                          # .squeeze()

    # pure-JAX reference (mirrors the PyTorch formula with an explicit inverse)
    A = jnp.matmul(X, jnp.transpose(X, (0, 2, 1))) + lam[0] * jnp.eye(K)[None]
    w = jnp.matmul(jnp.matmul(jnp.transpose(X, (0, 2, 1)), jnp.linalg.inv(A)), yrr)
    delta_w = w[:, :-1]                                                 # (B, HID, 1)
    delta_b = w[:, -1]                                                  # (B, 1)
    out = jnp.matmul(g_hat[:, None, :], delta_w).squeeze(2) + delta_b   # (B, 1)
    pred = out * sc + bi + y0[:, None]
    return pred.reshape(b)


# ----------------------------------- main --------------------------------------
if __name__ == "__main__":
    key = jax.random.PRNGKey(0)
    kp, k1, k2, k3, k4, k5 = jax.random.split(key, 6)

    params = make_params(kp)

    feature_ids = jax.random.randint(k1, (B, NUM_FIELDS), 0, VOCAB, jnp.int32)
    feature_vals = jax.random.uniform(k2, (B, NUM_FIELDS), jnp.float32)
    x_id_support = jax.random.randint(k3, (B, K, NUM_FIELDS), 0, VOCAB, jnp.int32)
    x_val_support = jax.random.uniform(k4, (B, K, NUM_FIELDS), jnp.float32)

    # support labels in {0, 1}, with -1 marking padded (invalid) samples
    y_raw = jax.random.bernoulli(k5, 0.5, (B, K)).astype(jnp.float32)
    valid_counts = jnp.array([3, 8, 1, 5], jnp.int32)        # >= 1 per user
    valid_mask = jnp.arange(K)[None, :] < valid_counts[:, None]
    y_support = jnp.where(valid_mask, y_raw, -1.0)

    support_data = (x_id_support, x_val_support, y_support)

    pred = resus_rr_forward(params, feature_ids, feature_vals, support_data,
                            use_pallas=True)
    pred = jax.block_until_ready(pred)

    ref = resus_rr_forward(params, feature_ids, feature_vals, support_data,
                           use_pallas=False)
    ref = jax.block_until_ready(ref)

    if pred.shape != (B,):
        raise AssertionError(f"unexpected output shape {pred.shape}")
    if not bool(jnp.allclose(pred, ref, rtol=1e-3, atol=1e-3)):
        raise AssertionError(f"mismatch: pallas={pred} ref={ref}")

    print("KERNEL_OK")
</pallas_src>

<mosaic_0001>
module attributes {stable_mosaic.version = 11 : i64} {
  func.func @resus_rr_kernel(%arg0: memref<1xf32, #tpu.memory_space<smem>>, %arg1: memref<4x9x33xf32, #tpu.memory_space<vmem>>, %arg2: memref<4x8x1xf32, #tpu.memory_space<vmem>>, %arg3: memref<4x1x3xf32, #tpu.memory_space<vmem>>, %arg4: memref<4x1x1xf32, #tpu.memory_space<vmem>>) attributes {dimension_semantics = [], scalar_prefetch = 0 : i64, scratch_operands = 0 : i64, tpu.core_type = #tpu.core_type<tc>} {
    %c0 = arith.constant 0 : index
    %c0_0 = arith.constant 0 : index
    %c0_1 = arith.constant 0 : index
    %0 = vector.load %arg1[%c0, %c0_0, %c0_1] : memref<4x9x33xf32, #tpu.memory_space<vmem>>, vector<4x9x33xf32>
    %c0_2 = arith.constant 0 : index
    %c0_3 = arith.constant 0 : index
    %c0_4 = arith.constant 0 : index
    %1 = vector.load %arg2[%c0_2, %c0_3, %c0_4] : memref<4x8x1xf32, #tpu.memory_space<vmem>>, vector<4x8x1xf32>
    %c0_5 = arith.constant 0 : index
    %2 = memref.load %arg0[%c0_5] : memref<1xf32, #tpu.memory_space<smem>>
    "tpu.trace_start"() <{level = 10 : i32, message = "bid,bjd->bij"}> : () -> ()
    %cst = arith.constant dense<0.000000e+00> : vector<4x9x9xf32>
    %3 = tpu.matmul %0, %0, %cst {dimension_numbers = #tpu.dot_dimension_numbers<[2], [2], [1], [1], [0, 0, 0, 1, 1, 1], [0], [0]>} : vector<4x9x33xf32>, vector<4x9x33xf32>, vector<4x9x9xf32> -> vector<4x9x9xf32>
    "tpu.trace_stop"() : () -> ()
    %4 = vector.extract_strided_slice %3 {offsets = [0, 0, 8], sizes = [4, 8, 1], strides = [1, 1, 1]} : vector<4x9x9xf32> to vector<4x8x1xf32>
    %5 = tpu.iota {dimensions = array<i32: 0>} : vector<8x8xi32>
    %6 = tpu.iota {dimensions = array<i32: 1>} : vector<8x8xi32>
    %7 = arith.cmpi eq, %5, %6 : vector<8x8xi32>
    %8 = arith.extui %7 : vector<8x8xi1> to vector<8x8xi32>
    %9 = arith.sitofp %8 : vector<8x8xi32> to vector<8x8xf32>
    %10 = vector.extract_strided_slice %3 {offsets = [0, 0, 0], sizes = [4, 8, 8], strides = [1, 1, 1]} : vector<4x9x9xf32> to vector<4x8x8xf32>
    %11 = vector.broadcast %2 : f32 to vector<8x8xf32>
    %12 = arith.mulf %11, %9 : vector<8x8xf32>
    %13 = vector.shape_cast %12 : vector<8x8xf32> to vector<1x8x8xf32>
    %14 = vector.broadcast %13 : vector<1x8x8xf32> to vector<4x8x8xf32>
    %15 = arith.addf %10, %14 : vector<4x8x8xf32>
    %16 = vector.extract_strided_slice %15 {offsets = [0, 0, 0], sizes = [4, 1, 1], strides = [1, 1, 1]} : vector<4x8x8xf32> to vector<4x1x1xf32>
    %17 = tpu.reciprocal %16 {approx = true} : vector<4x1x1xf32> -> vector<4x1x1xf32>
    %18 = arith.mulf %16, %17 : vector<4x1x1xf32>
    %cst_6 = arith.constant 2.000000e+00 : f32
    %19 = vector.broadcast %cst_6 : f32 to vector<4x1x1xf32>
    %20 = arith.subf %19, %18 : vector<4x1x1xf32>
    %21 = arith.mulf %17, %20 : vector<4x1x1xf32>
    %22 = vector.extract_strided_slice %15 {offsets = [0, 0, 0], sizes = [4, 1, 8], strides = [1, 1, 1]} : vector<4x8x8xf32> to vector<4x1x8xf32>
    %23 = vector.broadcast %21 : vector<4x1x1xf32> to vector<4x1x8xf32>
    %24 = arith.mulf %22, %23 : vector<4x1x8xf32>
    %25 = vector.extract_strided_slice %1 {offsets = [0, 0, 0], sizes = [4, 1, 1], strides = [1, 1, 1]} : vector<4x8x1xf32> to vector<4x1x1xf32>
    %26 = arith.mulf %25, %21 : vector<4x1x1xf32>
    %27 = vector.extract_strided_slice %15 {offsets = [0, 0, 0], sizes = [4, 8, 1], strides = [1, 1, 1]} : vector<4x8x8xf32> to vector<4x8x1xf32>
    %28 = vector.extract_strided_slice %9 {offsets = [0, 0], sizes = [8, 1], strides = [1, 1]} : vector<8x8xf32> to vector<8x1xf32>
    %29 = vector.shape_cast %28 : vector<8x1xf32> to vector<1x8x1xf32>
    %30 = vector.broadcast %29 : vector<1x8x1xf32> to vector<4x8x1xf32>
    %31 = arith.subf %27, %30 : vector<4x8x1xf32>
    %32 = vector.broadcast %31 : vector<4x8x1xf32> to vector<4x8x8xf32>
    %33 = vector.broadcast %24 : vector<4x1x8xf32> to vector<4x8x8xf32>
    %34 = arith.mulf %32, %33 : vector<4x8x8xf32>
    %35 = arith.subf %15, %34 : vector<4x8x8xf32>
    %36 = vector.broadcast %26 : vector<4x1x1xf32> to vector<4x8x1xf32>
    %37 = arith.mulf %31, %36 : vector<4x8x1xf32>
    %38 = arith.subf %1, %37 : vector<4x8x1xf32>
    %39 = vector.extract_strided_slice %35 {offsets = [0, 1, 1], sizes = [4, 1, 1], strides = [1, 1, 1]} : vector<4x8x8xf32> to vector<4x1x1xf32>
    %40 = tpu.reciprocal %39 {approx = true} : vector<4x1x1xf32> -> vector<4x1x1xf32>
    %41 = arith.mulf %39, %40 : vector<4x1x1xf32>
    %cst_7 = arith.constant 2.000000e+00 : f32
    %42 = vector.broadcast %cst_7 : f32 to vector<4x1x1xf32>
    %43 = arith.subf %42, %41 : vector<4x1x1xf32>
    %44 = arith.mulf %40, %43 : vector<4x1x1xf32>
    %45 = vector.extract_strided_slice %35 {offsets = [0, 1, 0], sizes = [4, 1, 8], strides = [1, 1, 1]} : vector<4x8x8xf32> to vector<4x1x8xf32>
    %46 = vector.broadcast %44 : vector<4x1x1xf32> to vector<4x1x8xf32>
    %47 = arith.mulf %45, %46 : vector<4x1x8xf32>
    %48 = vector.extract_strided_slice %38 {offsets = [0, 1, 0], sizes = [4, 1, 1], strides = [1, 1, 1]} : vector<4x8x1xf32> to vector<4x1x1xf32>
    %49 = arith.mulf %48, %44 : vector<4x1x1xf32>
    %50 = vector.extract_strided_slice %35 {offsets = [0, 0, 1], sizes = [4, 8, 1], strides = [1, 1, 1]} : vector<4x8x8xf32> to vector<4x8x1xf32>
    %51 = vector.extract_strided_slice %9 {offsets = [0, 1], sizes = [8, 1], strides = [1, 1]} : vector<8x8xf32> to vector<8x1xf32>
    %52 = vector.shape_cast %51 : vector<8x1xf32> to vector<1x8x1xf32>
    %53 = vector.broadcast %52 : vector<1x8x1xf32> to vector<4x8x1xf32>
    %54 = arith.subf %50, %53 : vector<4x8x1xf32>
    %55 = vector.broadcast %54 : vector<4x8x1xf32> to vector<4x8x8xf32>
    %56 = vector.broadcast %47 : vector<4x1x8xf32> to vector<4x8x8xf32>
    %57 = arith.mulf %55, %56 : vector<4x8x8xf32>
    %58 = arith.subf %35, %57 : vector<4x8x8xf32>
    %59 = vector.broadcast %49 : vector<4x1x1xf32> to vector<4x8x1xf32>
    %60 = arith.mulf %54, %59 : vector<4x8x1xf32>
    %61 = arith.subf %38, %60 : vector<4x8x1xf32>
    %62 = vector.extract_strided_slice %58 {offsets = [0, 2, 2], sizes = [4, 1, 1], strides = [1, 1, 1]} : vector<4x8x8xf32> to vector<4x1x1xf32>
    %63 = tpu.reciprocal %62 {approx = true} : vector<4x1x1xf32> -> vector<4x1x1xf32>
    %64 = arith.mulf %62, %63 : vector<4x1x1xf32>
    %cst_8 = arith.constant 2.000000e+00 : f32
    %65 = vector.broadcast %cst_8 : f32 to vector<4x1x1xf32>
    %66 = arith.subf %65, %64 : vector<4x1x1xf32>
    %67 = arith.mulf %63, %66 : vector<4x1x1xf32>
    %68 = vector.extract_strided_slice %58 {offsets = [0, 2, 0], sizes = [4, 1, 8], strides = [1, 1, 1]} : vector<4x8x8xf32> to vector<4x1x8xf32>
    %69 = vector.broadcast %67 : vector<4x1x1xf32> to vector<4x1x8xf32>
    %70 = arith.mulf %68, %69 : vector<4x1x8xf32>
    %71 = vector.extract_strided_slice %61 {offsets = [0, 2, 0], sizes = [4, 1, 1], strides = [1, 1, 1]} : vector<4x8x1xf32> to vector<4x1x1xf32>
    %72 = arith.mulf %71, %67 : vector<4x1x1xf32>
    %73 = vector.extract_strided_slice %58 {offsets = [0, 0, 2], sizes = [4, 8, 1], strides = [1, 1, 1]} : vector<4x8x8xf32> to vector<4x8x1xf32>
    %74 = vector.extract_strided_slice %9 {offsets = [0, 2], sizes = [8, 1], strides = [1, 1]} : vector<8x8xf32> to vector<8x1xf32>
    %75 = vector.shape_cast %74 : vector<8x1xf32> to vector<1x8x1xf32>
    %76 = vector.broadcast %75 : vector<1x8x1xf32> to vector<4x8x1xf32>
    %77 = arith.subf %73, %76 : vector<4x8x1xf32>
    %78 = vector.broadcast %77 : vector<4x8x1xf32> to vector<4x8x8xf32>
    %79 = vector.broadcast %70 : vector<4x1x8xf32> to vector<4x8x8xf32>
    %80 = arith.mulf %78, %79 : vector<4x8x8xf32>
    %81 = arith.subf %58, %80 : vector<4x8x8xf32>
    %82 = vector.broadcast %72 : vector<4x1x1xf32> to vector<4x8x1xf32>
    %83 = arith.mulf %77, %82 : vector<4x8x1xf32>
    %84 = arith.subf %61, %83 : vector<4x8x1xf32>
    %85 = vector.extract_strided_slice %81 {offsets = [0, 3, 3], sizes = [4, 1, 1], strides = [1, 1, 1]} : vector<4x8x8xf32> to vector<4x1x1xf32>
    %86 = tpu.reciprocal %85 {approx = true} : vector<4x1x1xf32> -> vector<4x1x1xf32>
    %87 = arith.mulf %85, %86 : vector<4x1x1xf32>
    %cst_9 = arith.constant 2.000000e+00 : f32
    %88 = vector.broadcast %cst_9 : f32 to vector<4x1x1xf32>
    %89 = arith.subf %88, %87 : vector<4x1x1xf32>
    %90 = arith.mulf %86, %89 : vector<4x1x1xf32>
    %91 = vector.extract_strided_slice %81 {offsets = [0, 3, 0], sizes = [4, 1, 8], strides = [1, 1, 1]} : vector<4x8x8xf32> to vector<4x1x8xf32>
    %92 = vector.broadcast %90 : vector<4x1x1xf32> to vector<4x1x8xf32>
    %93 = arith.mulf %91, %92 : vector<4x1x8xf32>
    %94 = vector.extract_strided_slice %84 {offsets = [0, 3, 0], sizes = [4, 1, 1], strides = [1, 1, 1]} : vector<4x8x1xf32> to vector<4x1x1xf32>
    %95 = arith.mulf %94, %90 : vector<4x1x1xf32>
    %96 = vector.extract_strided_slice %81 {offsets = [0, 0, 3], sizes = [4, 8, 1], strides = [1, 1, 1]} : vector<4x8x8xf32> to vector<4x8x1xf32>
    %97 = vector.extract_strided_slice %9 {offsets = [0, 3], sizes = [8, 1], strides = [1, 1]} : vector<8x8xf32> to vector<8x1xf32>
    %98 = vector.shape_cast %97 : vector<8x1xf32> to vector<1x8x1xf32>
    %99 = vector.broadcast %98 : vector<1x8x1xf32> to vector<4x8x1xf32>
    %100 = arith.subf %96, %99 : vector<4x8x1xf32>
    %101 = vector.broadcast %100 : vector<4x8x1xf32> to vector<4x8x8xf32>
    %102 = vector.broadcast %93 : vector<4x1x8xf32> to vector<4x8x8xf32>
    %103 = arith.mulf %101, %102 : vector<4x8x8xf32>
    %104 = arith.subf %81, %103 : vector<4x8x8xf32>
    %105 = vector.broadcast %95 : vector<4x1x1xf32> to vector<4x8x1xf32>
    %106 = arith.mulf %100, %105 : vector<4x8x1xf32>
    %107 = arith.subf %84, %106 : vector<4x8x1xf32>
    %108 = vector.extract_strided_slice %104 {offsets = [0, 4, 4], sizes = [4, 1, 1], strides = [1, 1, 1]} : vector<4x8x8xf32> to vector<4x1x1xf32>
    %109 = tpu.reciprocal %108 {approx = true} : vector<4x1x1xf32> -> vector<4x1x1xf32>
    %110 = arith.mulf %108, %109 : vector<4x1x1xf32>
    %cst_10 = arith.constant 2.000000e+00 : f32
    %111 = vector.broadcast %cst_10 : f32 to vector<4x1x1xf32>
    %112 = arith.subf %111, %110 : vector<4x1x1xf32>
    %113 = arith.mulf %109, %112 : vector<4x1x1xf32>
    %114 = vector.extract_strided_slice %104 {offsets = [0, 4, 0], sizes = [4, 1, 8], strides = [1, 1, 1]} : vector<4x8x8xf32> to vector<4x1x8xf32>
    %115 = vector.broadcast %113 : vector<4x1x1xf32> to vector<4x1x8xf32>
    %116 = arith.mulf %114, %115 : vector<4x1x8xf32>
    %117 = vector.extract_strided_slice %107 {offsets = [0, 4, 0], sizes = [4, 1, 1], strides = [1, 1, 1]} : vector<4x8x1xf32> to vector<4x1x1xf32>
    %118 = arith.mulf %117, %113 : vector<4x1x1xf32>
    %119 = vector.extract_strided_slice %104 {offsets = [0, 0, 4], sizes = [4, 8, 1], strides = [1, 1, 1]} : vector<4x8x8xf32> to vector<4x8x1xf32>
    %120 = vector.extract_strided_slice %9 {offsets = [0, 4], sizes = [8, 1], strides = [1, 1]} : vector<8x8xf32> to vector<8x1xf32>
    %121 = vector.shape_cast %120 : vector<8x1xf32> to vector<1x8x1xf32>
    %122 = vector.broadcast %121 : vector<1x8x1xf32> to vector<4x8x1xf32>
    %123 = arith.subf %119, %122 : vector<4x8x1xf32>
    %124 = vector.broadcast %123 : vector<4x8x1xf32> to vector<4x8x8xf32>
    %125 = vector.broadcast %116 : vector<4x1x8xf32> to vector<4x8x8xf32>
    %126 = arith.mulf %124, %125 : vector<4x8x8xf32>
    %127 = arith.subf %104, %126 : vector<4x8x8xf32>
    %128 = vector.broadcast %118 : vector<4x1x1xf32> to vector<4x8x1xf32>
    %129 = arith.mulf %123, %128 : vector<4x8x1xf32>
    %130 = arith.subf %107, %129 : vector<4x8x1xf32>
    %131 = vector.extract_strided_slice %127 {offsets = [0, 5, 5], sizes = [4, 1, 1], strides = [1, 1, 1]} : vector<4x8x8xf32> to vector<4x1x1xf32>
    %132 = tpu.reciprocal %131 {approx = true} : vector<4x1x1xf32> -> vector<4x1x1xf32>
    %133 = arith.mulf %131, %132 : vector<4x1x1xf32>
    %cst_11 = arith.constant 2.000000e+00 : f32
    %134 = vector.broadcast %cst_11 : f32 to vector<4x1x1xf32>
    %135 = arith.subf %134, %133 : vector<4x1x1xf32>
    %136 = arith.mulf %132, %135 : vector<4x1x1xf32>
    %137 = vector.extract_strided_slice %127 {offsets = [0, 5, 0], sizes = [4, 1, 8], strides = [1, 1, 1]} : vector<4x8x8xf32> to vector<4x1x8xf32>
    %138 = vector.broadcast %136 : vector<4x1x1xf32> to vector<4x1x8xf32>
    %139 = arith.mulf %137, %138 : vector<4x1x8xf32>
    %140 = vector.extract_strided_slice %130 {offsets = [0, 5, 0], sizes = [4, 1, 1], strides = [1, 1, 1]} : vector<4x8x1xf32> to vector<4x1x1xf32>
    %141 = arith.mulf %140, %136 : vector<4x1x1xf32>
    %142 = vector.extract_strided_slice %127 {offsets = [0, 0, 5], sizes = [4, 8, 1], strides = [1, 1, 1]} : vector<4x8x8xf32> to vector<4x8x1xf32>
    %143 = vector.extract_strided_slice %9 {offsets = [0, 5], sizes = [8, 1], strides = [1, 1]} : vector<8x8xf32> to vector<8x1xf32>
    %144 = vector.shape_cast %143 : vector<8x1xf32> to vector<1x8x1xf32>
    %145 = vector.broadcast %144 : vector<1x8x1xf32> to vector<4x8x1xf32>
    %146 = arith.subf %142, %145 : vector<4x8x1xf32>
    %147 = vector.broadcast %146 : vector<4x8x1xf32> to vector<4x8x8xf32>
    %148 = vector.broadcast %139 : vector<4x1x8xf32> to vector<4x8x8xf32>
    %149 = arith.mulf %147, %148 : vector<4x8x8xf32>
    %150 = arith.subf %127, %149 : vector<4x8x8xf32>
    %151 = vector.broadcast %141 : vector<4x1x1xf32> to vector<4x8x1xf32>
    %152 = arith.mulf %146, %151 : vector<4x8x1xf32>
    %153 = arith.subf %130, %152 : vector<4x8x1xf32>
    %154 = vector.extract_strided_slice %150 {offsets = [0, 6, 6], sizes = [4, 1, 1], strides = [1, 1, 1]} : vector<4x8x8xf32> to vector<4x1x1xf32>
    %155 = tpu.reciprocal %154 {approx = true} : vector<4x1x1xf32> -> vector<4x1x1xf32>
    %156 = arith.mulf %154, %155 : vector<4x1x1xf32>
    %cst_12 = arith.constant 2.000000e+00 : f32
    %157 = vector.broadcast %cst_12 : f32 to vector<4x1x1xf32>
    %158 = arith.subf %157, %156 : vector<4x1x1xf32>
    %159 = arith.mulf %155, %158 : vector<4x1x1xf32>
    %160 = vector.extract_strided_slice %150 {offsets = [0, 6, 0], sizes = [4, 1, 8], strides = [1, 1, 1]} : vector<4x8x8xf32> to vector<4x1x8xf32>
    %161 = vector.broadcast %159 : vector<4x1x1xf32> to vector<4x1x8xf32>
    %162 = arith.mulf %160, %161 : vector<4x1x8xf32>
    %163 = vector.extract_strided_slice %153 {offsets = [0, 6, 0], sizes = [4, 1, 1], strides = [1, 1, 1]} : vector<4x8x1xf32> to vector<4x1x1xf32>
    %164 = arith.mulf %163, %159 : vector<4x1x1xf32>
    %165 = vector.extract_strided_slice %150 {offsets = [0, 0, 6], sizes = [4, 8, 1], strides = [1, 1, 1]} : vector<4x8x8xf32> to vector<4x8x1xf32>
    %166 = vector.extract_strided_slice %9 {offsets = [0, 6], sizes = [8, 1], strides = [1, 1]} : vector<8x8xf32> to vector<8x1xf32>
    %167 = vector.shape_cast %166 : vector<8x1xf32> to vector<1x8x1xf32>
    %168 = vector.broadcast %167 : vector<1x8x1xf32> to vector<4x8x1xf32>
    %169 = arith.subf %165, %168 : vector<4x8x1xf32>
    %170 = vector.broadcast %169 : vector<4x8x1xf32> to vector<4x8x8xf32>
    %171 = vector.broadcast %162 : vector<4x1x8xf32> to vector<4x8x8xf32>
    %172 = arith.mulf %170, %171 : vector<4x8x8xf32>
    %173 = arith.subf %150, %172 : vector<4x8x8xf32>
    %174 = vector.broadcast %164 : vector<4x1x1xf32> to vector<4x8x1xf32>
    %175 = arith.mulf %169, %174 : vector<4x8x1xf32>
    %176 = arith.subf %153, %175 : vector<4x8x1xf32>
    %177 = vector.extract_strided_slice %173 {offsets = [0, 7, 7], sizes = [4, 1, 1], strides = [1, 1, 1]} : vector<4x8x8xf32> to vector<4x1x1xf32>
    %178 = tpu.reciprocal %177 {approx = true} : vector<4x1x1xf32> -> vector<4x1x1xf32>
    %179 = arith.mulf %177, %178 : vector<4x1x1xf32>
    %cst_13 = arith.constant 2.000000e+00 : f32
    %180 = vector.broadcast %cst_13 : f32 to vector<4x1x1xf32>
    %181 = arith.subf %180, %179 : vector<4x1x1xf32>
    %182 = arith.mulf %178, %181 : vector<4x1x1xf32>
    %183 = vector.extract_strided_slice %176 {offsets = [0, 7, 0], sizes = [4, 1, 1], strides = [1, 1, 1]} : vector<4x8x1xf32> to vector<4x1x1xf32>
    %184 = arith.mulf %183, %182 : vector<4x1x1xf32>
    %185 = vector.extract_strided_slice %173 {offsets = [0, 0, 7], sizes = [4, 8, 1], strides = [1, 1, 1]} : vector<4x8x8xf32> to vector<4x8x1xf32>
    %186 = vector.extract_strided_slice %9 {offsets = [0, 7], sizes = [8, 1], strides = [1, 1]} : vector<8x8xf32> to vector<8x1xf32>
    %187 = vector.shape_cast %186 : vector<8x1xf32> to vector<1x8x1xf32>
    %188 = vector.broadcast %187 : vector<1x8x1xf32> to vector<4x8x1xf32>
    %189 = arith.subf %185, %188 : vector<4x8x1xf32>
    %190 = vector.broadcast %184 : vector<4x1x1xf32> to vector<4x8x1xf32>
    %191 = arith.mulf %189, %190 : vector<4x8x1xf32>
    %192 = arith.subf %176, %191 : vector<4x8x1xf32>
    %193 = arith.mulf %4, %192 : vector<4x8x1xf32>
    %cst_14 = arith.constant dense<0.000000e+00> : vector<4x1xf32>
    %194 = vector.multi_reduction <add>, %193, %cst_14 [1] : vector<4x8x1xf32> to vector<4x1xf32>
    %195 = vector.shape_cast %194 : vector<4x1xf32> to vector<4x1x1xf32>
    %c0_15 = arith.constant 0 : index
    %c0_16 = arith.constant 0 : index
    %c0_17 = arith.constant 0 : index
    %196 = vector.load %arg3[%c0_15, %c0_16, %c0_17] : memref<4x1x3xf32, #tpu.memory_space<vmem>>, vector<4x1x3xf32>
    %197 = vector.extract_strided_slice %196 {offsets = [0, 0, 0], sizes = [4, 1, 1], strides = [1, 1, 1]} : vector<4x1x3xf32> to vector<4x1x1xf32>
    %198 = vector.extract_strided_slice %196 {offsets = [0, 0, 1], sizes = [4, 1, 1], strides = [1, 1, 1]} : vector<4x1x3xf32> to vector<4x1x1xf32>
    %199 = vector.extract_strided_slice %196 {offsets = [0, 0, 2], sizes = [4, 1, 1], strides = [1, 1, 1]} : vector<4x1x3xf32> to vector<4x1x1xf32>
    %200 = arith.mulf %195, %197 : vector<4x1x1xf32>
    %201 = arith.addf %200, %198 : vector<4x1x1xf32>
    %202 = arith.addf %201, %199 : vector<4x1x1xf32>
    %c0_18 = arith.constant 0 : index
    %c0_19 = arith.constant 0 : index
    %c0_20 = arith.constant 0 : index
    %203 = vector.load %arg4[%c0_18, %c0_19, %c0_20] : memref<4x1x1xf32, #tpu.memory_space<vmem>>, vector<4x1x1xf32>
    tpu.vector_store %arg4[%c0_18, %c0_19, %c0_20], %202 {strides = array<i32>} : memref<4x1x1xf32, #tpu.memory_space<vmem>>, vector<4x1x1xf32>,
    return
  }
}

</mosaic_0001>

<llo_original>
// kernel: mul.17
$region0: #{mul.17}
  %s0 = inlined_call_operand.vmem [shape: f32[4,9,4], index: 0, kind: input, shape index: {}]
  %s1 = inlined_call_operand.vmem [shape: f32[36,4], index: 1, kind: output, shape index: {}]
  $region1: #{mul.17} parent=0
    #allocation0 [shape = 'u8[4096]{0}', space=vmem, size = 0x1000, scoped, tag = 'scoped mem for output reshape']
    #allocation1 [shape = 'u8[16384]{0}', space=vmem, size = 0x4000, scoped, tag = 'scoped mem for input reshape']
    %s3 = sshllo.u32 0, 4
    %s4 = smul.addr 4, 3
    %s5 = scalar_lea.vmem %s0, %s4
    %v6 = vld [vmem:[%s5] sm:%s3]
    %s7 = scalar_lea.vmem [#allocation1], 24
    %8 = vst [vmem:[%s7] sm:%s3] %v6
    %s9 = smul.addr 4, 2
    %s10 = scalar_lea.vmem %s0, %s9
    %v11 = vld [vmem:[%s10] sm:%s3]
    %s12 = scalar_lea.vmem [#allocation1], 16
    %13 = vst [vmem:[%s12] sm:%s3] %v11
    %s14 = scalar_lea.vmem %s0, 4
    %v15 = vld [vmem:[%s14] sm:%s3]
    %s16 = scalar_lea.vmem [#allocation1], 8
    %17 = vst [vmem:[%s16] sm:%s3] %v15
    %v18 = vld [vmem:[%s0] sm:%s3]
    %19 = vst [vmem:[#allocation1] sm:%s3] %v18
    %v20 = vld [vmem:[#allocation1] ss:$8 sm:$0xf]
    %vm21 = vcmask 72704
    %22 = vst.msk [vmem:[#allocation0] sm:$0xf] %vm21, %v20
    %s23 = scalar_lea.vmem [#allocation1], 3
    %v24 = vld [vmem:[%s23] ss:$8 sm:$0xf]
    %25 = vrot.lane.b32.xlu0 %v24, 27
    %v26 = vpop.permute.xlu0 %25
    %vm27 = vcmask 294104
    %28 = vst.msk [vmem:[#allocation0] sm:$0xf] %vm27, %v26
    %s29 = scalar_lea.vmem [#allocation1], 2
    %v30 = vld [vmem:[%s29] ss:$8 sm:$0xf]
    %31 = vrot.lane.b32.xlu0 %v30, 18
    %v32 = vpop.permute.xlu0 %31
    %vm33 = vcmask 220304
    %34 = vst.msk [vmem:[#allocation0] sm:$0xf] %vm33, %v32
    %s35 = scalar_lea.vmem [#allocation1], 1
    %v36 = vld [vmem:[%s35] ss:$8 sm:$0xf]
    %37 = vrot.lane.b32.xlu0 %v36, 9
    %v38 = vpop.permute.xlu0 %37
    %vm39 = vcmask 146504
    %40 = vst.msk [vmem:[#allocation0] sm:$0xf] %vm39, %v38
    %s42 = sshllo.u32 0, 4
    %v44 = vld [vmem:[#allocation0] sm:%s42]
    %s45 = sshllo.u32 0, 4
    %46 = vst [vmem:[%s1] sm:%s45] %v44

// kernel: resus_rr_forward.1
$region0: #{resus_rr_forward.1}
  #allocation0 [shape = 'u32[]', space=smem, size = 0x4, offset = 0x4, fixed_abs, tag = 'smem constant byte address 0x4 - core index']
  #allocation1 [shape = 'u32[144,128]{1,0:T(1,128)}', space=vmem, size = 0x12000, scoped, tag = 'internal scratch']
  #allocation2 [shape = 'f32[1]{0:T(128)S(6)}', space=smem, size = 0x200, scoped, tag = 'scoped memory for resus_rr_forward.1']
  %s0 = inlined_call_operand.<no memory space> [shape: f32[1], index: 0, kind: input, shape index: {}]
  %s1 = inlined_call_operand.vmem [shape: f32[4,9,33], index: 1, kind: input, shape index: {}]
  %s2 = inlined_call_operand.vmem [shape: f32[4,8,1], index: 2, kind: input, shape index: {}]
  %s3 = inlined_call_operand.vmem [shape: f32[4,1,3], index: 3, kind: input, shape index: {}]
  %s4 = inlined_call_operand.vmem [shape: f32[4,1,1], index: 4, kind: output, shape index: {}]
  %s5 = sld [smem:[#allocation0]]
  $region26: #{resus_rr_forward.1} parent=0
    _
  %s7 = ssub.s32 1, %s5
  %s8 = scalar_select 0, %s7, %s5
  %9 = sst [smem:[#allocation2]] %s0
  // Predicated region
  $region2: #{resus_rr_forward.1} parent=0 // pred_check
    _
  $region3: #{resus_rr_forward.1} parent=0 // pred_check_branch
    %11 = sbr.rel (0) target = $region5
  $region4: #{resus_rr_forward.1} parent=0 // pred_region
    _
  $region5: #{resus_rr_forward.1} parent=0 // pred_fallthru
    _
  // Predicated region
  $region6: #{resus_rr_forward.1} parent=0 // pred_check
    _
  $region7: #{resus_rr_forward.1} parent=0 // pred_check_branch
    %13 = sbr.rel (0) target = $region9
  $region8: #{resus_rr_forward.1} parent=0 // pred_region
    _
  $region9: #{resus_rr_forward.1} parent=0 // pred_fallthru
    _
  // Predicated region
  $region10: #{resus_rr_forward.1} parent=0 // pred_check
    _
  $region11: #{resus_rr_forward.1} parent=0 // pred_check_branch
    %15 = sbr.rel (0) target = $region13
  $region12: #{resus_rr_forward.1} parent=0 // pred_region
    _
  $region13: #{resus_rr_forward.1} parent=0 // pred_fallthru
    _
  // Predicated region
  $region14: #{resus_rr_forward.1} parent=0 // pred_check
    _
  $region15: #{resus_rr_forward.1} parent=0 // pred_check_branch
    %17 = sbr.rel (0) target = $region17
  $region16: #{resus_rr_forward.1} parent=0 // pred_region
    _
  $region17: #{resus_rr_forward.1} parent=0 // pred_fallthru
    _
  %v18 = vld [vmem:[%s1] sm:$0xff]
  %v19 = vld [vmem:[%s1 + $0x8] sm:$0x1]
  %v20 = vld [vmem:[%s1 + $0x10] sm:$0xff]
  %v21 = vld [vmem:[%s1 + $0x18] sm:$0x1]
  %v22 = vld [vmem:[%s1 + $0x20] sm:$0xff]
  %v23 = vld [vmem:[%s1 + $0x28] sm:$0x1]
  %v24 = vld [vmem:[%s1 + $0x30] sm:$0xff]
  %v25 = vld [vmem:[%s1 + $0x38] sm:$0x1]
  %v26 = vld [vmem:[%s2] sm:$0xff]
  %v27 = vld [vmem:[%s2 + $0x8] sm:$0xff]
  %v28 = vld [vmem:[%s2 + $0x10] sm:$0xff]
  %v29 = vld [vmem:[%s2 + $0x18] sm:$0xff]
  %s30 = sld [smem:[#allocation2]]
  %vm31 = vcmask 269312
  %v33 = vsel %vm31, %v18, 0
  %v36 = vsel %vm31, %v19, 0
  %38 = vmatprep.subr.mxu0 0.0
  %39 = vmatpush1.xpose.msra.mxu0 %v33
  %40 = vmatprep.subr.mxu0 0.0
  %41 = vmatpush1.xpose.msra.mxu0 %v36
  %42 = vmatprep.subr.mxu0 0.0
  %43 = vmatpush1.xpose.msra.mxu0 0.0
  %44 = vmatprep.subr.mxu0 0.0
  %45 = vmatpush1.xpose.msra.mxu0 0.0
  %46 = vmatprep.subr.mxu0 0.0
  %47 = vmatpush1.xpose.msra.mxu0 0.0
  %48 = vmatprep.subr.mxu0 0.0
  %49 = vmatpush1.xpose.msra.mxu0 0.0
  %50 = vmatprep.subr.mxu0 0.0
  %51 = vmatpush1.xpose.msra.mxu0 0.0
  %52 = vmatprep.subr.mxu0 0.0
  %53 = vmatpush1.xpose.msra.mxu0 0.0
  %54 = vmatprep.subr.mxu0 0.0
  %55 = vmatpush1.xpose.msra.mxu0 0.0
  %56 = vmatprep.subr.mxu0 0.0
  %57 = vmatpush1.xpose.msra.mxu0 0.0
  %58 = vmatprep.subr.mxu0 0.0
  %59 = vmatpush1.xpose.msra.mxu0 0.0
  %60 = vmatprep.subr.mxu0 0.0
  %61 = vmatpush1.xpose.msra.mxu0 0.0
  %62 = vmatprep.subr.mxu0 0.0
  %63 = vmatpush1.xpose.msra.mxu0 0.0
  %64 = vmatprep.subr.mxu0 0.0
  %65 = vmatpush1.xpose.msra.mxu0 0.0
  %66 = vmatprep.subr.mxu0 0.0
  %67 = vmatpush1.xpose.msra.mxu0 0.0
  %68 = vmatprep.subr.mxu0 0.0
  %69 = vmatpush1.xpose.msra.mxu0 0.0
  %70 = vmatprep.subr.mxu0 0.0
  %71 = vmatpush1.xpose.msra.mxu0 0.0
  %72 = vmatprep.subr.mxu0 0.0
  %73 = vmatpush1.xpose.msra.mxu0 0.0
  %74 = vmatprep.subr.mxu0 0.0
  %75 = vmatpush1.xpose.msra.mxu0 0.0
  %76 = vmatprep.subr.mxu0 0.0
  %77 = vmatpush1.xpose.msra.mxu0 0.0
  %78 = vmatprep.subr.mxu0 0.0
  %79 = vmatpush1.xpose.msra.mxu0 0.0
  %80 = vmatprep.subr.mxu0 0.0
  %81 = vmatpush1.xpose.msra.mxu0 0.0
  %82 = vmatprep.subr.mxu0 0.0
  %83 = vmatpush1.xpose.msra.mxu0 0.0
  %84 = vmatprep.subr.mxu0 0.0
  %85 = vmatpush1.xpose.msra.mxu0 0.0
  %86 = vmatprep.subr.mxu0 0.0
  %87 = vmatpush1.xpose.msra.mxu0 0.0
  %88 = vmatprep.subr.mxu0 0.0
  %89 = vmatpush1.xpose.msra.mxu0 0.0
  %90 = vmatprep.subr.mxu0 0.0
  %91 = vmatpush1.xpose.msra.mxu0 0.0
  %92 = vmatprep.subr.mxu0 0.0
  %93 = vmatpush1.xpose.msra.mxu0 0.0
  %94 = vmatprep.subr.mxu0 0.0
  %95 = vmatpush1.xpose.msra.mxu0 0.0
  %96 = vmatprep.subr.mxu0 0.0
  %97 = vmatpush1.xpose.msra.mxu0 0.0
  %98 = vmatprep.subr.mxu0 0.0
  %99 = vmatpush1.xpose.msra.mxu0 0.0
  %100 = vmatprep.subr.mxu0 0.0
  %101 = vmatpush1.xpose.msra.mxu0 0.0
  %102 = vmatprep.mubr.f32.mxu0 0.0
  %103 = vmatmul.mubr.f32.gmra.mrb[0].mxu0 %v33
  %v104 = vpop.f32.mrb[0].mxu0
  %v105 = vadd.f32 0.0, %v104
  %v106 = vpop.f32.mrb[0].mxu0
  %107 = vmatprep.mubr.f32.mxu0 0.0
  %108 = vmatmul.mubr.f32.gmra.mrb[0].mxu0 %v36
  %v109 = vpop.f32.mrb[0].mxu0
  %v110 = vpop.f32.mrb[0].mxu0
  %111 = vdwg.mxu0
  %v113 = vsel %vm31, %v20, 0
  %v116 = vsel %vm31, %v21, 0
  %118 = vmatprep.subr.mxu0 0.0
  %119 = vmatpush1.xpose.msra.mxu0 %v113
  %120 = vmatprep.subr.mxu0 0.0
  %121 = vmatpush1.xpose.msra.mxu0 %v116
  %122 = vmatprep.subr.mxu0 0.0
  %123 = vmatpush1.xpose.msra.mxu0 0.0
  %124 = vmatprep.subr.mxu0 0.0
  %125 = vmatpush1.xpose.msra.mxu0 0.0
  %126 = vmatprep.subr.mxu0 0.0
  %127 = vmatpush1.xpose.msra.mxu0 0.0
  %128 = vmatprep.subr.mxu0 0.0
  %129 = vmatpush1.xpose.msra.mxu0 0.0
  %130 = vmatprep.subr.mxu0 0.0
  %131 = vmatpush1.xpose.msra.mxu0 0.0
  %132 = vmatprep.subr.mxu0 0.0
  %133 = vmatpush1.xpose.msra.mxu0 0.0
  %134 = vmatprep.subr.mxu0 0.0
  %135 = vmatpush1.xpose.msra.mxu0 0.0
  %136 = vmatprep.subr.mxu0 0.0
  %137 = vmatpush1.xpose.msra.mxu0 0.0
  %138 = vmatprep.subr.mxu0 0.0
  %139 = vmatpush1.xpose.msra.mxu0 0.0
  %140 = vmatprep.subr.mxu0 0.0
  %141 = vmatpush1.xpose.msra.mxu0 0.0
  %142 = vmatprep.subr.mxu0 0.0
  %143 = vmatpush1.xpose.msra.mxu0 0.0
  %144 = vmatprep.subr.mxu0 0.0
  %145 = vmatpush1.xpose.msra.mxu0 0.0
  %146 = vmatprep.subr.mxu0 0.0
  %147 = vmatpush1.xpose.msra.mxu0 0.0
  %148 = vmatprep.subr.mxu0 0.0
  %149 = vmatpush1.xpose.msra.mxu0 0.0
  %150 = vmatprep.subr.mxu0 0.0
  %151 = vmatpush1.xpose.msra.mxu0 0.0
  %152 = vmatprep.subr.mxu0 0.0
  %153 = vmatpush1.xpose.msra.mxu0 0.0
  %154 = vmatprep.subr.mxu0 0.0
  %155 = vmatpush1.xpose.msra.mxu0 0.0
  %156 = vmatprep.subr.mxu0 0.0
  %157 = vmatpush1.xpose.msra.mxu0 0.0
  %158 = vmatprep.subr.mxu0 0.0
  %159 = vmatpush1.xpose.msra.mxu0 0.0
  %160 = vmatprep.subr.mxu0 0.0
  %161 = vmatpush1.xpose.msra.mxu0 0.0
  %162 = vmatprep.subr.mxu0 0.0
  %163 = vmatpush1.xpose.msra.mxu0 0.0
  %164 = vmatprep.subr.mxu0 0.0
  %165 = vmatpush1.xpose.msra.mxu0 0.0
  %166 = vmatprep.subr.mxu0 0.0
  %167 = vmatpush1.xpose.msra.mxu0 0.0
  %168 = vmatprep.subr.mxu0 0.0
  %169 = vmatpush1.xpose.msra.mxu0 0.0
  %170 = vmatprep.subr.mxu0 0.0
  %171 = vmatpush1.xpose.msra.mxu0 0.0
  %172 = vmatprep.subr.mxu0 0.0
  %173 = vmatpush1.xpose.msra.mxu0 0.0
  %174 = vmatprep.subr.mxu0 0.0
  %175 = vmatpush1.xpose.msra.mxu0 0.0
  %176 = vmatprep.subr.mxu0 0.0
  %177 = vmatpush1.xpose.msra.mxu0 0.0
  %178 = vmatprep.subr.mxu0 0.0
  %179 = vmatpush1.xpose.msra.mxu0 0.0
  %180 = vmatprep.subr.mxu0 0.0
  %181 = vmatpush1.xpose.msra.mxu0 0.0
  %182 = vmatprep.mubr.f32.mxu0 0.0
  %183 = vmatmul.mubr.f32.gmra.mrb[0].mxu0 %v113
  %v184 = vpop.f32.mrb[0].mxu0
  %v185 = vadd.f32 0.0, %v184
  %v186 = vpop.f32.mrb[0].mxu0
  %187 = vmatprep.mubr.f32.mxu0 0.0
  %188 = vmatmul.mubr.f32.gmra.mrb[0].mxu0 %v116
  %v189 = vpop.f32.mrb[0].mxu0
  %v190 = vpop.f32.mrb[0].mxu0
  %191 = vdwg.mxu0
  %v193 = vsel %vm31, %v22, 0
  %v196 = vsel %vm31, %v23, 0
  %198 = vmatprep.subr.mxu0 0.0
  %199 = vmatpush1.xpose.msra.mxu0 %v193
  %200 = vmatprep.subr.mxu0 0.0
  %201 = vmatpush1.xpose.msra.mxu0 %v196
  %202 = vmatprep.subr.mxu0 0.0
  %203 = vmatpush1.xpose.msra.mxu0 0.0
  %204 = vmatprep.subr.mxu0 0.0
  %205 = vmatpush1.xpose.msra.mxu0 0.0
  %206 = vmatprep.subr.mxu0 0.0
  %207 = vmatpush1.xpose.msra.mxu0 0.0
  %208 = vmatprep.subr.mxu0 0.0
  %209 = vmatpush1.xpose.msra.mxu0 0.0
  %210 = vmatprep.subr.mxu0 0.0
  %211 = vmatpush1.xpose.msra.mxu0 0.0
  %212 = vmatprep.subr.mxu0 0.0
  %213 = vmatpush1.xpose.msra.mxu0 0.0
  %214 = vmatprep.subr.mxu0 0.0
  %215 = vmatpush1.xpose.msra.mxu0 0.0
  %216 = vmatprep.subr.mxu0 0.0
  %217 = vmatpush1.xpose.msra.mxu0 0.0
  %218 = vmatprep.subr.mxu0 0.0
  %219 = vmatpush1.xpose.msra.mxu0 0.0
  %220 = vmatprep.subr.mxu0 0.0
  %221 = vmatpush1.xpose.msra.mxu0 0.0
  %222 = vmatprep.subr.mxu0 0.0
  %223 = vmatpush1.xpose.msra.mxu0 0.0
  %224 = vmatprep.subr.mxu0 0.0
  %225 = vmatpush1.xpose.msra.mxu0 0.0
  %226 = vmatprep.subr.mxu0 0.0
  %227 = vmatpush1.xpose.msra.mxu0 0.0
  %228 = vmatprep.subr.mxu0 0.0
  %229 = vmatpush1.xpose.msra.mxu0 0.0
  %230 = vmatprep.subr.mxu0 0.0
  %231 = vmatpush1.xpose.msra.mxu0 0.0
  %232 = vmatprep.subr.mxu0 0.0
  %233 = vmatpush1.xpose.msra.mxu0 0.0
  %234 = vmatprep.subr.mxu0 0.0
  %235 = vmatpush1.xpose.msra.mxu0 0.0
  %236 = vmatprep.subr.mxu0 0.0
  %237 = vmatpush1.xpose.msra.mxu0 0.0
  %238 = vmatprep.subr.mxu0 0.0
  %239 = vmatpush1.xpose.msra.mxu0 0.0
  %240 = vmatprep.subr.mxu0 0.0
  %241 = vmatpush1.xpose.msra.mxu0 0.0
  %242 = vmatprep.subr.mxu0 0.0
  %243 = vmatpush1.xpose.msra.mxu0 0.0
  %244 = vmatprep.subr.mxu0 0.0
  %245 = vmatpush1.xpose.msra.mxu0 0.0
  %246 = vmatprep.subr.mxu0 0.0
  %247 = vmatpush1.xpose.msra.mxu0 0.0
  %248 = vmatprep.subr.mxu0 0.0
  %249 = vmatpush1.xpose.msra.mxu0 0.0
  %250 = vmatprep.subr.mxu0 0.0
  %251 = vmatpush1.xpose.msra.mxu0 0.0
  %252 = vmatprep.subr.mxu0 0.0
  %253 = vmatpush1.xpose.msra.mxu0 0.0
  %254 = vmatprep.subr.mxu0 0.0
  %255 = vmatpush1.xpose.msra.mxu0 0.0
  %256 = vmatprep.subr.mxu0 0.0
  %257 = vmatpush1.xpose.msra.mxu0 0.0
  %258 = vmatprep.subr.mxu0 0.0
  %259 = vmatpush1.xpose.msra.mxu0 0.0
  %260 = vmatprep.subr.mxu0 0.0
  %261 = vmatpush1.xpose.msra.mxu0 0.0
  %262 = vmatprep.mubr.f32.mxu0 0.0
  %263 = vmatmul.mubr.f32.gmra.mrb[0].mxu0 %v193
  %v264 = vpop.f32.mrb[0].mxu0
  %v265 = vadd.f32 0.0, %v264
  %v266 = vpop.f32.mrb[0].mxu0
  %267 = vmatprep.mubr.f32.mxu0 0.0
  %268 = vmatmul.mubr.f32.gmra.mrb[0].mxu0 %v196
  %v269 = vpop.f32.mrb[0].mxu0
  %v270 = vpop.f32.mrb[0].mxu0
  %271 = vdwg.mxu0
  %v273 = vsel %vm31, %v24, 0
  %v276 = vsel %vm31, %v25, 0
  %278 = vmatprep.subr.mxu0 0.0
  %279 = vmatpush1.xpose.msra.mxu0 %v273
  %280 = vmatprep.subr.mxu0 0.0
  %281 = vmatpush1.xpose.msra.mxu0 %v276
  %282 = vmatprep.subr.mxu0 0.0
  %283 = vmatpush1.xpose.msra.mxu0 0.0
  %284 = vmatprep.subr.mxu0 0.0
  %285 = vmatpush1.xpose.msra.mxu0 0.0
  %286 = vmatprep.subr.mxu0 0.0
  %287 = vmatpush1.xpose.msra.mxu0 0.0
  %288 = vmatprep.subr.mxu0 0.0
  %289 = vmatpush1.xpose.msra.mxu0 0.0
  %290 = vmatprep.subr.mxu0 0.0
  %291 = vmatpush1.xpose.msra.mxu0 0.0
  %292 = vmatprep.subr.mxu0 0.0
  %293 = vmatpush1.xpose.msra.mxu0 0.0
  %294 = vmatprep.subr.mxu0 0.0
  %295 = vmatpush1.xpose.msra.mxu0 0.0
  %296 = vmatprep.subr.mxu0 0.0
  %297 = vmatpush1.xpose.msra.mxu0 0.0
  %298 = vmatprep.subr.mxu0 0.0
  %299 = vmatpush1.xpose.msra.mxu0 0.0
  %300 = vmatprep.subr.mxu0 0.0
  %301 = vmatpush1.xpose.msra.mxu0 0.0
  %302 = vmatprep.subr.mxu0 0.0
  %303 = vmatpush1.xpose.msra.mxu0 0.0
  %304 = vmatprep.subr.mxu0 0.0
  %305 = vmatpush1.xpose.msra.mxu0 0.0
  %306 = vmatprep.subr.mxu0 0.0
  %307 = vmatpush1.xpose.msra.mxu0 0.0
  %308 = vmatprep.subr.mxu0 0.0
  %309 = vmatpush1.xpose.msra.mxu0 0.0
  %310 = vmatprep.subr.mxu0 0.0
  %311 = vmatpush1.xpose.msra.mxu0 0.0
  %312 = vmatprep.subr.mxu0 0.0
  %313 = vmatpush1.xpose.msra.mxu0 0.0
  %314 = vmatprep.subr.mxu0 0.0
  %315 = vmatpush1.xpose.msra.mxu0 0.0
  %316 = vmatprep.subr.mxu0 0.0
  %317 = vmatpush1.xpose.msra.mxu0 0.0
  %318 = vmatprep.subr.mxu0 0.0
  %319 = vmatpush1.xpose.msra.mxu0 0.0
  %320 = vmatprep.subr.mxu0 0.0
  %321 = vmatpush1.xpose.msra.mxu0 0.0
  %322 = vmatprep.subr.mxu0 0.0
  %323 = vmatpush1.xpose.msra.mxu0 0.0
  %324 = vmatprep.subr.mxu0 0.0
  %325 = vmatpush1.xpose.msra.mxu0 0.0
  %326 = vmatprep.subr.mxu0 0.0
  %327 = vmatpush1.xpose.msra.mxu0 0.0
  %328 = vmatprep.subr.mxu0 0.0
  %329 = vmatpush1.xpose.msra.mxu0 0.0
  %330 = vmatprep.subr.mxu0 0.0
  %331 = vmatpush1.xpose.msra.mxu0 0.0
  %332 = vmatprep.subr.mxu0 0.0
  %333 = vmatpush1.xpose.msra.mxu0 0.0
  %334 = vmatprep.subr.mxu0 0.0
  %335 = vmatpush1.xpose.msra.mxu0 0.0
  %336 = vmatprep.subr.mxu0 0.0
  %337 = vmatpush1.xpose.msra.mxu0 0.0
  %338 = vmatprep.subr.mxu0 0.0
  %339 = vmatpush1.xpose.msra.mxu0 0.0
  %340 = vmatprep.subr.mxu0 0.0
  %341 = vmatpush1.xpose.msra.mxu0 0.0
  %342 = vmatprep.mubr.f32.mxu0 0.0
  %343 = vmatmul.mubr.f32.gmra.mrb[0].mxu0 %v273
  %v344 = vpop.f32.mrb[0].mxu0
  %v345 = vadd.f32 0.0, %v344
  %v346 = vpop.f32.mrb[0].mxu0
  %347 = vmatprep.mubr.f32.mxu0 0.0
  %348 = vmatmul.mubr.f32.gmra.mrb[0].mxu0 %v276
  %v349 = vpop.f32.mrb[0].mxu0
  %v350 = vpop.f32.mrb[0].mxu0
  %351 = vdwg.mxu0
  %v352 = vlaneseq
  %v353 = vshrl.u32 %v352, 7
  %v354 = vlaneseq
  %v355 = vand.u32 %v354, 127
  %vm356 = vcmp.eq.s32.totalorder %v353, %v355
  %v357 = vsel %vm356, 1, 0
  %v358 = vcvt.s32.f32 %v357
  %v359 = vstv %s30
  %v360 = vmul.f32 %v359, %v358
  %v361 = vadd.f32 %v105, %v360
  %v362 = vadd.f32 %v185, %v360
  %v363 = vadd.f32 %v265, %v360
  %v364 = vadd.f32 %v345, %v360
  %v365 = vrcp.pop %v361
  %v366 = vrcp.pop %v362
  %v367 = vrcp.pop %v363
  %v368 = vrcp.pop %v364
  %v369 = vmul.f32 %v361, %v365
  %v370 = vmul.f32 %v362, %v366
  %v371 = vmul.f32 %v363, %v367
  %v372 = vmul.f32 %v364, %v368
  %v373 = vsub.f32 2.0, %v369
  %v374 = vsub.f32 2.0, %v370
  %v375 = vsub.f32 2.0, %v371
  %v376 = vsub.f32 2.0, %v372
  %v377 = vmul.f32 %v365, %v373
  %v378 = vmul.f32 %v366, %v374
  %v379 = vmul.f32 %v367, %v375
  %v380 = vmul.f32 %v368, %v376
  %382 = vset.pattern.permute.xlu0 0
  %383 = vperm.xlu0 %382, %v377
  %v384 = vpop.permute.xlu0 %383
  %387 = vset.pattern.permute.xlu0 0
  %388 = vperm.xlu0 %387, %v378
  %v389 = vpop.permute.xlu0 %388
  %392 = vset.pattern.permute.xlu0 0
  %393 = vperm.xlu0 %392, %v379
  %v394 = vpop.permute.xlu0 %393
  %397 = vset.pattern.permute.xlu0 0
  %398 = vperm.xlu0 %397, %v380
  %v399 = vpop.permute.xlu0 %398
  %v401 = vmul.f32 %v361, %v384
  %v402 = vmul.f32 %v362, %v389
  %v403 = vmul.f32 %v363, %v394
  %v404 = vmul.f32 %v364, %v399
  %v405 = vmul.f32 %v26, %v377
  %v406 = vmul.f32 %v27, %v378
  %v407 = vmul.f32 %v28, %v379
  %v408 = vmul.f32 %v29, %v380
  %v409 = vsub.f32 %v361, %v358
  %v410 = vsub.f32 %v362, %v358
  %v411 = vsub.f32 %v363, %v358
  %v412 = vsub.f32 %v364, %v358
  %414 = vset.pattern.permute.xlu0 0
  %415 = vperm.xlu0 %414, %v409
  %v416 = vpop.permute.xlu0 %415
  %419 = vset.pattern.permute.xlu0 0
  %420 = vperm.xlu0 %419, %v410
  %v421 = vpop.permute.xlu0 %420
  %424 = vset.pattern.permute.xlu0 0
  %425 = vperm.xlu0 %424, %v411
  %v426 = vpop.permute.xlu0 %425
  %429 = vset.pattern.permute.xlu0 0
  %430 = vperm.xlu0 %429, %v412
  %v431 = vpop.permute.xlu0 %430
  %v433 = vlaneseq
  %v434 = vshrl.u32 %v433, 7
  %v435 = vsub.s32 0, %v434
  %v436 = vrot.slane %v401, %v435
  %v437 = vlaneseq
  %v438 = vshrl.u32 %v437, 7
  %v439 = vsub.s32 0, %v438
  %v440 = vrot.slane %v402, %v439
  %v441 = vlaneseq
  %v442 = vshrl.u32 %v441, 7
  %v443 = vsub.s32 0, %v442
  %v444 = vrot.slane %v403, %v443
  %v445 = vlaneseq
  %v446 = vshrl.u32 %v445, 7
  %v447 = vsub.s32 0, %v446
  %v448 = vrot.slane %v404, %v447
  %v449 = vmul.f32 %v416, %v436
  %v450 = vmul.f32 %v421, %v440
  %v451 = vmul.f32 %v426, %v444
  %v452 = vmul.f32 %v431, %v448
  %v453 = vsub.f32 %v361, %v449
  %v454 = vsub.f32 %v362, %v450
  %v455 = vsub.f32 %v363, %v451
  %v456 = vsub.f32 %v364, %v452
  %v457 = vlaneseq
  %v458 = vshrl.u32 %v457, 7
  %v459 = vsub.s32 0, %v458
  %v460 = vrot.slane %v405, %v459
  %v461 = vlaneseq
  %v462 = vshrl.u32 %v461, 7
  %v463 = vsub.s32 0, %v462
  %v464 = vrot.slane %v406, %v463
  %v465 = vlaneseq
  %v466 = vshrl.u32 %v465, 7
  %v467 = vsub.s32 0, %v466
  %v468 = vrot.slane %v407, %v467
  %v469 = vlaneseq
  %v470 = vshrl.u32 %v469, 7
  %v471 = vsub.s32 0, %v470
  %v472 = vrot.slane %v408, %v471
  %v473 = vmul.f32 %v409, %v460
  %v474 = vmul.f32 %v410, %v464
  %v475 = vmul.f32 %v411, %v468
  %v476 = vmul.f32 %v412, %v472
  %v477 = vsub.f32 %v26, %v473
  %v478 = vsub.f32 %v27, %v474
  %v479 = vsub.f32 %v28, %v475
  %v480 = vsub.f32 %v29, %v476
  %v481 = vrcp.pop %v453
  %v482 = vrcp.pop %v454
  %v483 = vrcp.pop %v455
  %v484 = vrcp.pop %v456
  %v485 = vmul.f32 %v453, %v481
  %v486 = vmul.f32 %v454, %v482
  %v487 = vmul.f32 %v455, %v483
  %v488 = vmul.f32 %v456, %v484
  %v489 = vsub.f32 2.0, %v485
  %v490 = vsub.f32 2.0, %v486
  %v491 = vsub.f32 2.0, %v487
  %v492 = vsub.f32 2.0, %v488
  %v493 = vmul.f32 %v481, %v489
  %v494 = vmul.f32 %v482, %v490
  %v495 = vmul.f32 %v483, %v491
  %v496 = vmul.f32 %v484, %v492
  %498 = vset.pattern.permute.xlu0 1
  %499 = vperm.xlu0 %498, %v493
  %v500 = vpop.permute.xlu0 %499
  %503 = vset.pattern.permute.xlu0 1
  %504 = vperm.xlu0 %503, %v494
  %v505 = vpop.permute.xlu0 %504
  %508 = vset.pattern.permute.xlu0 1
  %509 = vperm.xlu0 %508, %v495
  %v510 = vpop.permute.xlu0 %509
  %513 = vset.pattern.permute.xlu0 1
  %514 = vperm.xlu0 %513, %v496
  %v515 = vpop.permute.xlu0 %514
  %v517 = vmul.f32 %v453, %v500
  %v518 = vmul.f32 %v454, %v505
  %v519 = vmul.f32 %v455, %v510
  %v520 = vmul.f32 %v456, %v515
  %521 = vrot.lane.b32.xlu0 %v493, 127
  %v522 = vpop.permute.xlu0 %521
  %523 = vrot.lane.b32.xlu0 %v494, 127
  %v524 = vpop.permute.xlu0 %523
  %525 = vrot.lane.b32.xlu0 %v495, 127
  %v526 = vpop.permute.xlu0 %525
  %527 = vrot.lane.b32.xlu0 %v496, 127
  %v528 = vpop.permute.xlu0 %527
  %v533 = vmul.f32 %v477, %v522
  %v534 = vmul.f32 %v478, %v524
  %v535 = vmul.f32 %v479, %v526
  %v536 = vmul.f32 %v480, %v528
  %v537 = vsub.f32 %v453, %v358
  %v538 = vsub.f32 %v454, %v358
  %v539 = vsub.f32 %v455, %v358
  %v540 = vsub.f32 %v456, %v358
  %542 = vset.pattern.permute.xlu0 1
  %543 = vperm.xlu0 %542, %v537
  %v544 = vpop.permute.xlu0 %543
  %547 = vset.pattern.permute.xlu0 1
  %548 = vperm.xlu0 %547, %v538
  %v549 = vpop.permute.xlu0 %548
  %552 = vset.pattern.permute.xlu0 1
  %553 = vperm.xlu0 %552, %v539
  %v554 = vpop.permute.xlu0 %553
  %557 = vset.pattern.permute.xlu0 1
  %558 = vperm.xlu0 %557, %v540
  %v559 = vpop.permute.xlu0 %558
  %v561 = vlaneseq
  %v562 = vshrl.u32 %v561, 7
  %v563 = vsub.s32 1, %v562
  %v564 = vrot.slane %v517, %v563
  %v565 = vlaneseq
  %v566 = vshrl.u32 %v565, 7
  %v567 = vsub.s32 1, %v566
  %v568 = vrot.slane %v518, %v567
  %v569 = vlaneseq
  %v570 = vshrl.u32 %v569, 7
  %v571 = vsub.s32 1, %v570
  %v572 = vrot.slane %v519, %v571
  %v573 = vlaneseq
  %v574 = vshrl.u32 %v573, 7
  %v575 = vsub.s32 1, %v574
  %v576 = vrot.slane %v520, %v575
  %v577 = vmul.f32 %v544, %v564
  %v578 = vmul.f32 %v549, %v568
  %v579 = vmul.f32 %v554, %v572
  %v580 = vmul.f32 %v559, %v576
  %v581 = vsub.f32 %v453, %v577
  %v582 = vsub.f32 %v454, %v578
  %v583 = vsub.f32 %v455, %v579
  %v584 = vsub.f32 %v456, %v580
  %v585 = vlaneseq
  %v586 = vshrl.u32 %v585, 7
  %v587 = vsub.s32 1, %v586
  %v588 = vrot.slane %v533, %v587
  %v589 = vlaneseq
  %v590 = vshrl.u32 %v589, 7
  %v591 = vsub.s32 1, %v590
  %v592 = vrot.slane %v534, %v591
  %v593 = vlaneseq
  %v594 = vshrl.u32 %v593, 7
  %v595 = vsub.s32 1, %v594
  %v596 = vrot.slane %v535, %v595
  %v597 = vlaneseq
  %v598 = vshrl.u32 %v597, 7
  %v599 = vsub.s32 1, %v598
  %v600 = vrot.slane %v536, %v599
  %605 = vrot.lane.b32.xlu0 %v588, 1
  %v606 = vpop.permute.xlu0 %605
  %607 = vrot.lane.b32.xlu0 %v592, 1
  %v608 = vpop.permute.xlu0 %607
  %609 = vrot.lane.b32.xlu0 %v596, 1
  %v610 = vpop.permute.xlu0 %609
  %611 = vrot.lane.b32.xlu0 %v600, 1
  %v612 = vpop.permute.xlu0 %611
  %v617 = vmul.f32 %v537, %v606
  %v618 = vmul.f32 %v538, %v608
  %v619 = vmul.f32 %v539, %v610
  %v620 = vmul.f32 %v540, %v612
  %625 = vrot.lane.b32.xlu0 %v617, 127
  %v626 = vpop.permute.xlu0 %625
  %627 = vrot.lane.b32.xlu0 %v618, 127
  %v628 = vpop.permute.xlu0 %627
  %629 = vrot.lane.b32.xlu0 %v619, 127
  %v630 = vpop.permute.xlu0 %629
  %631 = vrot.lane.b32.xlu0 %v620, 127
  %v632 = vpop.permute.xlu0 %631
  %v637 = vsub.f32 %v477, %v626
  %v638 = vsub.f32 %v478, %v628
  %v639 = vsub.f32 %v479, %v630
  %v640 = vsub.f32 %v480, %v632
  %v641 = vrcp.pop %v581
  %v642 = vrcp.pop %v582
  %v643 = vrcp.pop %v583
  %v644 = vrcp.pop %v584
  %v645 = vmul.f32 %v581, %v641
  %v646 = vmul.f32 %v582, %v642
  %v647 = vmul.f32 %v583, %v643
  %v648 = vmul.f32 %v584, %v644
  %v649 = vsub.f32 2.0, %v645
  %v650 = vsub.f32 2.0, %v646
  %v651 = vsub.f32 2.0, %v647
  %v652 = vsub.f32 2.0, %v648
  %v653 = vmul.f32 %v641, %v649
  %v654 = vmul.f32 %v642, %v650
  %v655 = vmul.f32 %v643, %v651
  %v656 = vmul.f32 %v644, %v652
  %658 = vset.pattern.permute.xlu0 2
  %659 = vperm.xlu0 %658, %v653
  %v660 = vpop.permute.xlu0 %659
  %663 = vset.pattern.permute.xlu0 2
  %664 = vperm.xlu0 %663, %v654
  %v665 = vpop.permute.xlu0 %664
  %668 = vset.pattern.permute.xlu0 2
  %669 = vperm.xlu0 %668, %v655
  %v670 = vpop.permute.xlu0 %669
  %673 = vset.pattern.permute.xlu0 2
  %674 = vperm.xlu0 %673, %v656
  %v675 = vpop.permute.xlu0 %674
  %v677 = vmul.f32 %v581, %v660
  %v678 = vmul.f32 %v582, %v665
  %v679 = vmul.f32 %v583, %v670
  %v680 = vmul.f32 %v584, %v675
  %681 = vrot.lane.b32.xlu0 %v653, 126
  %v682 = vpop.permute.xlu0 %681
  %683 = vrot.lane.b32.xlu0 %v654, 126
  %v684 = vpop.permute.xlu0 %683
  %685 = vrot.lane.b32.xlu0 %v655, 126
  %v686 = vpop.permute.xlu0 %685
  %687 = vrot.lane.b32.xlu0 %v656, 126
  %v688 = vpop.permute.xlu0 %687
  %v693 = vmul.f32 %v637, %v682
  %v694 = vmul.f32 %v638, %v684
  %v695 = vmul.f32 %v639, %v686
  %v696 = vmul.f32 %v640, %v688
  %v697 = vsub.f32 %v581, %v358
  %v698 = vsub.f32 %v582, %v358
  %v699 = vsub.f32 %v583, %v358
  %v700 = vsub.f32 %v584, %v358
  %702 = vset.pattern.permute.xlu0 2
  %703 = vperm.xlu0 %702, %v697
  %v704 = vpop.permute.xlu0 %703
  %707 = vset.pattern.permute.xlu0 2
  %708 = vperm.xlu0 %707, %v698
  %v709 = vpop.permute.xlu0 %708
  %712 = vset.pattern.permute.xlu0 2
  %713 = vperm.xlu0 %712, %v699
  %v714 = vpop.permute.xlu0 %713
  %717 = vset.pattern.permute.xlu0 2
  %718 = vperm.xlu0 %717, %v700
  %v719 = vpop.permute.xlu0 %718
  %v721 = vlaneseq
  %v722 = vshrl.u32 %v721, 7
  %v723 = vsub.s32 2, %v722
  %v724 = vrot.slane %v677, %v723
  %v725 = vlaneseq
  %v726 = vshrl.u32 %v725, 7
  %v727 = vsub.s32 2, %v726
  %v728 = vrot.slane %v678, %v727
  %v729 = vlaneseq
  %v730 = vshrl.u32 %v729, 7
  %v731 = vsub.s32 2, %v730
  %v732 = vrot.slane %v679, %v731
  %v733 = vlaneseq
  %v734 = vshrl.u32 %v733, 7
  %v735 = vsub.s32 2, %v734
  %v736 = vrot.slane %v680, %v735
  %v737 = vmul.f32 %v704, %v724
  %v738 = vmul.f32 %v709, %v728
  %v739 = vmul.f32 %v714, %v732
  %v740 = vmul.f32 %v719, %v736
  %v741 = vsub.f32 %v581, %v737
  %v742 = vsub.f32 %v582, %v738
  %v743 = vsub.f32 %v583, %v739
  %v744 = vsub.f32 %v584, %v740
  %v745 = vlaneseq
  %v746 = vshrl.u32 %v745, 7
  %v747 = vsub.s32 2, %v746
  %v748 = vrot.slane %v693, %v747
  %v749 = vlaneseq
  %v750 = vshrl.u32 %v749, 7
  %v751 = vsub.s32 2, %v750
  %v752 = vrot.slane %v694, %v751
  %v753 = vlaneseq
  %v754 = vshrl.u32 %v753, 7
  %v755 = vsub.s32 2, %v754
  %v756 = vrot.slane %v695, %v755
  %v757 = vlaneseq
  %v758 = vshrl.u32 %v757, 7
  %v759 = vsub.s32 2, %v758
  %v760 = vrot.slane %v696, %v759
  %765 = vrot.lane.b32.xlu0 %v748, 2
  %v766 = vpop.permute.xlu0 %765
  %767 = vrot.lane.b32.xlu0 %v752, 2
  %v768 = vpop.permute.xlu0 %767
  %769 = vrot.lane.b32.xlu0 %v756, 2
  %v770 = vpop.permute.xlu0 %769
  %771 = vrot.lane.b32.xlu0 %v760, 2
  %v772 = vpop.permute.xlu0 %771
  %v777 = vmul.f32 %v697, %v766
  %v778 = vmul.f32 %v698, %v768
  %v779 = vmul.f32 %v699, %v770
  %v780 = vmul.f32 %v700, %v772
  %785 = vrot.lane.b32.xlu0 %v777, 126
  %v786 = vpop.permute.xlu0 %785
  %787 = vrot.lane.b32.xlu0 %v778, 126
  %v788 = vpop.permute.xlu0 %787
  %789 = vrot.lane.b32.xlu0 %v779, 126
  %v790 = vpop.permute.xlu0 %789
  %791 = vrot.lane.b32.xlu0 %v780, 126
  %v792 = vpop.permute.xlu0 %791
  %v797 = vsub.f32 %v637, %v786
  %v798 = vsub.f32 %v638, %v788
  %v799 = vsub.f32 %v639, %v790
  %v800 = vsub.f32 %v640, %v792
  %v801 = vrcp.pop %v741
  %v802 = vrcp.pop %v742
  %v803 = vrcp.pop %v743
  %v804 = vrcp.pop %v744
  %v805 = vmul.f32 %v741, %v801
  %v806 = vmul.f32 %v742, %v802
  %v807 = vmul.f32 %v743, %v803
  %v808 = vmul.f32 %v744, %v804
  %v809 = vsub.f32 2.0, %v805
  %v810 = vsub.f32 2.0, %v806
  %v811 = vsub.f32 2.0, %v807
  %v812 = vsub.f32 2.0, %v808
  %v813 = vmul.f32 %v801, %v809
  %v814 = vmul.f32 %v802, %v810
  %v815 = vmul.f32 %v803, %v811
  %v816 = vmul.f32 %v804, %v812
  %818 = vset.pattern.permute.xlu0 3
  %819 = vperm.xlu0 %818, %v813
  %v820 = vpop.permute.xlu0 %819
  %823 = vset.pattern.permute.xlu0 3
  %824 = vperm.xlu0 %823, %v814
  %v825 = vpop.permute.xlu0 %824
  %828 = vset.pattern.permute.xlu0 3
  %829 = vperm.xlu0 %828, %v815
  %v830 = vpop.permute.xlu0 %829
  %833 = vset.pattern.permute.xlu0 3
  %834 = vperm.xlu0 %833, %v816
  %v835 = vpop.permute.xlu0 %834
  %v837 = vmul.f32 %v741, %v820
  %v838 = vmul.f32 %v742, %v825
  %v839 = vmul.f32 %v743, %v830
  %v840 = vmul.f32 %v744, %v835
  %841 = vrot.lane.b32.xlu0 %v813, 125
  %v842 = vpop.permute.xlu0 %841
  %843 = vrot.lane.b32.xlu0 %v814, 125
  %v844 = vpop.permute.xlu0 %843
  %845 = vrot.lane.b32.xlu0 %v815, 125
  %v846 = vpop.permute.xlu0 %845
  %847 = vrot.lane.b32.xlu0 %v816, 125
  %v848 = vpop.permute.xlu0 %847
  %v853 = vmul.f32 %v797, %v842
  %v854 = vmul.f32 %v798, %v844
  %v855 = vmul.f32 %v799, %v846
  %v856 = vmul.f32 %v800, %v848
  %v857 = vsub.f32 %v741, %v358
  %v858 = vsub.f32 %v742, %v358
  %v859 = vsub.f32 %v743, %v358
  %v860 = vsub.f32 %v744, %v358
  %862 = vset.pattern.permute.xlu0 3
  %863 = vperm.xlu0 %862, %v857
  %v864 = vpop.permute.xlu0 %863
  %867 = vset.pattern.permute.xlu0 3
  %868 = vperm.xlu0 %867, %v858
  %v869 = vpop.permute.xlu0 %868
  %872 = vset.pattern.permute.xlu0 3
  %873 = vperm.xlu0 %872, %v859
  %v874 = vpop.permute.xlu0 %873
  %877 = vset.pattern.permute.xlu0 3
  %878 = vperm.xlu0 %877, %v860
  %v879 = vpop.permute.xlu0 %878
  %v881 = vlaneseq
  %v882 = vshrl.u32 %v881, 7
  %v883 = vsub.s32 3, %v882
  %v884 = vrot.slane %v837, %v883
  %v885 = vlaneseq
  %v886 = vshrl.u32 %v885, 7
  %v887 = vsub.s32 3, %v886
  %v888 = vrot.slane %v838, %v887
  %v889 = vlaneseq
  %v890 = vshrl.u32 %v889, 7
  %v891 = vsub.s32 3, %v890
  %v892 = vrot.slane %v839, %v891
  %v893 = vlaneseq
  %v894 = vshrl.u32 %v893, 7
  %v895 = vsub.s32 3, %v894
  %v896 = vrot.slane %v840, %v895
  %v897 = vmul.f32 %v864, %v884
  %v898 = vmul.f32 %v869, %v888
  %v899 = vmul.f32 %v874, %v892
  %v900 = vmul.f32 %v879, %v896
  %v901 = vsub.f32 %v741, %v897
  %v902 = vsub.f32 %v742, %v898
  %v903 = vsub.f32 %v743, %v899
  %v904 = vsub.f32 %v744, %v900
  %v905 = vlaneseq
  %v906 = vshrl.u32 %v905, 7
  %v907 = vsub.s32 3, %v906
  %v908 = vrot.slane %v853, %v907
  %v909 = vlaneseq
  %v910 = vshrl.u32 %v909, 7
  %v911 = vsub.s32 3, %v910
  %v912 = vrot.slane %v854, %v911
  %v913 = vlaneseq
  %v914 = vshrl.u32 %v913, 7
  %v915 = vsub.s32 3, %v914
  %v916 = vrot.slane %v855, %v915
  %v917 = vlaneseq
  %v918 = vshrl.u32 %v917, 7
  %v919 = vsub.s32 3, %v918
  %v920 = vrot.slane %v856, %v919
  %925 = vrot.lane.b32.xlu0 %v908, 3
  %v926 = vpop.permute.xlu0 %925
  %927 = vrot.lane.b32.xlu0 %v912, 3
  %v928 = vpop.permute.xlu0 %927
  %929 = vrot.lane.b32.xlu0 %v916, 3
  %v930 = vpop.permute.xlu0 %929
  %931 = vrot.lane.b32.xlu0 %v920, 3
  %v932 = vpop.permute.xlu0 %931
  %v937 = vmul.f32 %v857, %v926
  %v938 = vmul.f32 %v858, %v928
  %v939 = vmul.f32 %v859, %v930
  %v940 = vmul.f32 %v860, %v932
  %945 = vrot.lane.b32.xlu0 %v937, 125
  %v946 = vpop.permute.xlu0 %945
  %947 = vrot.lane.b32.xlu0 %v938, 125
  %v948 = vpop.permute.xlu0 %947
  %949 = vrot.lane.b32.xlu0 %v939, 125
  %v950 = vpop.permute.xlu0 %949
  %951 = vrot.lane.b32.xlu0 %v940, 125
  %v952 = vpop.permute.xlu0 %951
  %v957 = vsub.f32 %v797, %v946
  %v958 = vsub.f32 %v798, %v948
  %v959 = vsub.f32 %v799, %v950
  %v960 = vsub.f32 %v800, %v952
  %v961 = vrcp.pop %v901
  %v962 = vrcp.pop %v902
  %v963 = vrcp.pop %v903
  %v964 = vrcp.pop %v904
  %v965 = vmul.f32 %v901, %v961
  %v966 = vmul.f32 %v902, %v962
  %v967 = vmul.f32 %v903, %v963
  %v968 = vmul.f32 %v904, %v964
  %v969 = vsub.f32 2.0, %v965
  %v970 = vsub.f32 2.0, %v966
  %v971 = vsub.f32 2.0, %v967
  %v972 = vsub.f32 2.0, %v968
  %v973 = vmul.f32 %v961, %v969
  %v974 = vmul.f32 %v962, %v970
  %v975 = vmul.f32 %v963, %v971
  %v976 = vmul.f32 %v964, %v972
  %978 = vset.pattern.permute.xlu0 4
  %979 = vperm.xlu0 %978, %v973
  %v980 = vpop.permute.xlu0 %979
  %983 = vset.pattern.permute.xlu0 4
  %984 = vperm.xlu0 %983, %v974
  %v985 = vpop.permute.xlu0 %984
  %988 = vset.pattern.permute.xlu0 4
  %989 = vperm.xlu0 %988, %v975
  %v990 = vpop.permute.xlu0 %989
  %993 = vset.pattern.permute.xlu0 4
  %994 = vperm.xlu0 %993, %v976
  %v995 = vpop.permute.xlu0 %994
  %v997 = vmul.f32 %v901, %v980
  %v998 = vmul.f32 %v902, %v985
  %v999 = vmul.f32 %v903, %v990
  %v1000 = vmul.f32 %v904, %v995
  %1001 = vrot.lane.b32.xlu0 %v973, 124
  %v1002 = vpop.permute.xlu0 %1001
  %1003 = vrot.lane.b32.xlu0 %v974, 124
  %v1004 = vpop.permute.xlu0 %1003
  %1005 = vrot.lane.b32.xlu0 %v975, 124
  %v1006 = vpop.permute.xlu0 %1005
  %1007 = vrot.lane.b32.xlu0 %v976, 124
  %v1008 = vpop.permute.xlu0 %1007
  %v1013 = vmul.f32 %v957, %v1002
  %v1014 = vmul.f32 %v958, %v1004
  %v1015 = vmul.f32 %v959, %v1006
  %v1016 = vmul.f32 %v960, %v1008
  %v1017 = vsub.f32 %v901, %v358
  %v1018 = vsub.f32 %v902, %v358
  %v1019 = vsub.f32 %v903, %v358
  %v1020 = vsub.f32 %v904, %v358
  %1022 = vset.pattern.permute.xlu0 4
  %1023 = vperm.xlu0 %1022, %v1017
  %v1024 = vpop.permute.xlu0 %1023
  %1027 = vset.pattern.permute.xlu0 4
  %1028 = vperm.xlu0 %1027, %v1018
  %v1029 = vpop.permute.xlu0 %1028
  %1032 = vset.pattern.permute.xlu0 4
  %1033 = vperm.xlu0 %1032, %v1019
  %v1034 = vpop.permute.xlu0 %1033
  %1037 = vset.pattern.permute.xlu0 4
  %1038 = vperm.xlu0 %1037, %v1020
  %v1039 = vpop.permute.xlu0 %1038
  %v1041 = vlaneseq
  %v1042 = vshrl.u32 %v1041, 7
  %v1043 = vsub.s32 4, %v1042
  %v1044 = vrot.slane %v997, %v1043
  %v1045 = vlaneseq
  %v1046 = vshrl.u32 %v1045, 7
  %v1047 = vsub.s32 4, %v1046
  %v1048 = vrot.slane %v998, %v1047
  %v1049 = vlaneseq
  %v1050 = vshrl.u32 %v1049, 7
  %v1051 = vsub.s32 4, %v1050
  %v1052 = vrot.slane %v999, %v1051
  %v1053 = vlaneseq
  %v1054 = vshrl.u32 %v1053, 7
  %v1055 = vsub.s32 4, %v1054
  %v1056 = vrot.slane %v1000, %v1055
  %v1057 = vmul.f32 %v1024, %v1044
  %v1058 = vmul.f32 %v1029, %v1048
  %v1059 = vmul.f32 %v1034, %v1052
  %v1060 = vmul.f32 %v1039, %v1056
  %v1061 = vsub.f32 %v901, %v1057
  %v1062 = vsub.f32 %v902, %v1058
  %v1063 = vsub.f32 %v903, %v1059
  %v1064 = vsub.f32 %v904, %v1060
  %v1065 = vlaneseq
  %v1066 = vshrl.u32 %v1065, 7
  %v1067 = vsub.s32 4, %v1066
  %v1068 = vrot.slane %v1013, %v1067
  %v1069 = vlaneseq
  %v1070 = vshrl.u32 %v1069, 7
  %v1071 = vsub.s32 4, %v1070
  %v1072 = vrot.slane %v1014, %v1071
  %v1073 = vlaneseq
  %v1074 = vshrl.u32 %v1073, 7
  %v1075 = vsub.s32 4, %v1074
  %v1076 = vrot.slane %v1015, %v1075
  %v1077 = vlaneseq
  %v1078 = vshrl.u32 %v1077, 7
  %v1079 = vsub.s32 4, %v1078
  %v1080 = vrot.slane %v1016, %v1079
  %1085 = vrot.lane.b32.xlu0 %v1068, 4
  %v1086 = vpop.permute.xlu0 %1085
  %1087 = vrot.lane.b32.xlu0 %v1072, 4
  %v1088 = vpop.permute.xlu0 %1087
  %1089 = vrot.lane.b32.xlu0 %v1076, 4
  %v1090 = vpop.permute.xlu0 %1089
  %1091 = vrot.lane.b32.xlu0 %v1080, 4
  %v1092 = vpop.permute.xlu0 %1091
  %v1097 = vmul.f32 %v1017, %v1086
  %v1098 = vmul.f32 %v1018, %v1088
  %v1099 = vmul.f32 %v1019, %v1090
  %v1100 = vmul.f32 %v1020, %v1092
  %1105 = vrot.lane.b32.xlu0 %v1097, 124
  %v1106 = vpop.permute.xlu0 %1105
  %1107 = vrot.lane.b32.xlu0 %v1098, 124
  %v1108 = vpop.permute.xlu0 %1107
  %1109 = vrot.lane.b32.xlu0 %v1099, 124
  %v1110 = vpop.permute.xlu0 %1109
  %1111 = vrot.lane.b32.xlu0 %v1100, 124
  %v1112 = vpop.permute.xlu0 %1111
  %v1117 = vsub.f32 %v957, %v1106
  %v1118 = vsub.f32 %v958, %v1108
  %v1119 = vsub.f32 %v959, %v1110
  %v1120 = vsub.f32 %v960, %v1112
  %v1121 = vrcp.pop %v1061
  %v1122 = vrcp.pop %v1062
  %v1123 = vrcp.pop %v1063
  %v1124 = vrcp.pop %v1064
  %v1125 = vmul.f32 %v1061, %v1121
  %v1126 = vmul.f32 %v1062, %v1122
  %v1127 = vmul.f32 %v1063, %v1123
  %v1128 = vmul.f32 %v1064, %v1124
  %v1129 = vsub.f32 2.0, %v1125
  %v1130 = vsub.f32 2.0, %v1126
  %v1131 = vsub.f32 2.0, %v1127
  %v1132 = vsub.f32 2.0, %v1128
  %v1133 = vmul.f32 %v1121, %v1129
  %v1134 = vmul.f32 %v1122, %v1130
  %v1135 = vmul.f32 %v1123, %v1131
  %v1136 = vmul.f32 %v1124, %v1132
  %1138 = vset.pattern.permute.xlu0 5
  %1139 = vperm.xlu0 %1138, %v1133
  %v1140 = vpop.permute.xlu0 %1139
  %1143 = vset.pattern.permute.xlu0 5
  %1144 = vperm.xlu0 %1143, %v1134
  %v1145 = vpop.permute.xlu0 %1144
  %1148 = vset.pattern.permute.xlu0 5
  %1149 = vperm.xlu0 %1148, %v1135
  %v1150 = vpop.permute.xlu0 %1149
  %1153 = vset.pattern.permute.xlu0 5
  %1154 = vperm.xlu0 %1153, %v1136
  %v1155 = vpop.permute.xlu0 %1154
  %v1157 = vmul.f32 %v1061, %v1140
  %v1158 = vmul.f32 %v1062, %v1145
  %v1159 = vmul.f32 %v1063, %v1150
  %v1160 = vmul.f32 %v1064, %v1155
  %1161 = vrot.lane.b32.xlu0 %v1133, 123
  %v1162 = vpop.permute.xlu0 %1161
  %1163 = vrot.lane.b32.xlu0 %v1134, 123
  %v1164 = vpop.permute.xlu0 %1163
  %1165 = vrot.lane.b32.xlu0 %v1135, 123
  %v1166 = vpop.permute.xlu0 %1165
  %1167 = vrot.lane.b32.xlu0 %v1136, 123
  %v1168 = vpop.permute.xlu0 %1167
  %v1173 = vmul.f32 %v1117, %v1162
  %v1174 = vmul.f32 %v1118, %v1164
  %v1175 = vmul.f32 %v1119, %v1166
  %v1176 = vmul.f32 %v1120, %v1168
  %v1177 = vsub.f32 %v1061, %v358
  %v1178 = vsub.f32 %v1062, %v358
  %v1179 = vsub.f32 %v1063, %v358
  %v1180 = vsub.f32 %v1064, %v358
  %1182 = vset.pattern.permute.xlu0 5
  %1183 = vperm.xlu0 %1182, %v1177
  %v1184 = vpop.permute.xlu0 %1183
  %1187 = vset.pattern.permute.xlu0 5
  %1188 = vperm.xlu0 %1187, %v1178
  %v1189 = vpop.permute.xlu0 %1188
  %1192 = vset.pattern.permute.xlu0 5
  %1193 = vperm.xlu0 %1192, %v1179
  %v1194 = vpop.permute.xlu0 %1193
  %1197 = vset.pattern.permute.xlu0 5
  %1198 = vperm.xlu0 %1197, %v1180
  %v1199 = vpop.permute.xlu0 %1198
  %v1201 = vlaneseq
  %v1202 = vshrl.u32 %v1201, 7
  %v1203 = vsub.s32 5, %v1202
  %v1204 = vrot.slane %v1157, %v1203
  %v1205 = vlaneseq
  %v1206 = vshrl.u32 %v1205, 7
  %v1207 = vsub.s32 5, %v1206
  %v1208 = vrot.slane %v1158, %v1207
  %v1209 = vlaneseq
  %v1210 = vshrl.u32 %v1209, 7
  %v1211 = vsub.s32 5, %v1210
  %v1212 = vrot.slane %v1159, %v1211
  %v1213 = vlaneseq
  %v1214 = vshrl.u32 %v1213, 7
  %v1215 = vsub.s32 5, %v1214
  %v1216 = vrot.slane %v1160, %v1215
  %v1217 = vmul.f32 %v1184, %v1204
  %v1218 = vmul.f32 %v1189, %v1208
  %v1219 = vmul.f32 %v1194, %v1212
  %v1220 = vmul.f32 %v1199, %v1216
  %v1221 = vsub.f32 %v1061, %v1217
  %v1222 = vsub.f32 %v1062, %v1218
  %v1223 = vsub.f32 %v1063, %v1219
  %v1224 = vsub.f32 %v1064, %v1220
  %v1225 = vlaneseq
  %v1226 = vshrl.u32 %v1225, 7
  %v1227 = vsub.s32 5, %v1226
  %v1228 = vrot.slane %v1173, %v1227
  %v1229 = vlaneseq
  %v1230 = vshrl.u32 %v1229, 7
  %v1231 = vsub.s32 5, %v1230
  %v1232 = vrot.slane %v1174, %v1231
  %v1233 = vlaneseq
  %v1234 = vshrl.u32 %v1233, 7
  %v1235 = vsub.s32 5, %v1234
  %v1236 = vrot.slane %v1175, %v1235
  %v1237 = vlaneseq
  %v1238 = vshrl.u32 %v1237, 7
  %v1239 = vsub.s32 5, %v1238
  %v1240 = vrot.slane %v1176, %v1239
  %1245 = vrot.lane.b32.xlu0 %v1228, 5
  %v1246 = vpop.permute.xlu0 %1245
  %1247 = vrot.lane.b32.xlu0 %v1232, 5
  %v1248 = vpop.permute.xlu0 %1247
  %1249 = vrot.lane.b32.xlu0 %v1236, 5
  %v1250 = vpop.permute.xlu0 %1249
  %1251 = vrot.lane.b32.xlu0 %v1240, 5
  %v1252 = vpop.permute.xlu0 %1251
  %v1257 = vmul.f32 %v1177, %v1246
  %v1258 = vmul.f32 %v1178, %v1248
  %v1259 = vmul.f32 %v1179, %v1250
  %v1260 = vmul.f32 %v1180, %v1252
  %1265 = vrot.lane.b32.xlu0 %v1257, 123
  %v1266 = vpop.permute.xlu0 %1265
  %1267 = vrot.lane.b32.xlu0 %v1258, 123
  %v1268 = vpop.permute.xlu0 %1267
  %1269 = vrot.lane.b32.xlu0 %v1259, 123
  %v1270 = vpop.permute.xlu0 %1269
  %1271 = vrot.lane.b32.xlu0 %v1260, 123
  %v1272 = vpop.permute.xlu0 %1271
  %v1277 = vsub.f32 %v1117, %v1266
  %v1278 = vsub.f32 %v1118, %v1268
  %v1279 = vsub.f32 %v1119, %v1270
  %v1280 = vsub.f32 %v1120, %v1272
  %v1281 = vrcp.pop %v1221
  %v1282 = vrcp.pop %v1222
  %v1283 = vrcp.pop %v1223
  %v1284 = vrcp.pop %v1224
  %v1285 = vmul.f32 %v1221, %v1281
  %v1286 = vmul.f32 %v1222, %v1282
  %v1287 = vmul.f32 %v1223, %v1283
  %v1288 = vmul.f32 %v1224, %v1284
  %v1289 = vsub.f32 2.0, %v1285
  %v1290 = vsub.f32 2.0, %v1286
  %v1291 = vsub.f32 2.0, %v1287
  %v1292 = vsub.f32 2.0, %v1288
  %v1293 = vmul.f32 %v1281, %v1289
  %v1294 = vmul.f32 %v1282, %v1290
  %v1295 = vmul.f32 %v1283, %v1291
  %v1296 = vmul.f32 %v1284, %v1292
  %1298 = vset.pattern.permute.xlu0 6
  %1299 = vperm.xlu0 %1298, %v1293
  %v1300 = vpop.permute.xlu0 %1299
  %1303 = vset.pattern.permute.xlu0 6
  %1304 = vperm.xlu0 %1303, %v1294
  %v1305 = vpop.permute.xlu0 %1304
  %1308 = vset.pattern.permute.xlu0 6
  %1309 = vperm.xlu0 %1308, %v1295
  %v1310 = vpop.permute.xlu0 %1309
  %1313 = vset.pattern.permute.xlu0 6
  %1314 = vperm.xlu0 %1313, %v1296
  %v1315 = vpop.permute.xlu0 %1314
  %v1317 = vmul.f32 %v1221, %v1300
  %v1318 = vmul.f32 %v1222, %v1305
  %v1319 = vmul.f32 %v1223, %v1310
  %v1320 = vmul.f32 %v1224, %v1315
  %1321 = vrot.lane.b32.xlu0 %v1293, 122
  %v1322 = vpop.permute.xlu0 %1321
  %1323 = vrot.lane.b32.xlu0 %v1294, 122
  %v1324 = vpop.permute.xlu0 %1323
  %1325 = vrot.lane.b32.xlu0 %v1295, 122
  %v1326 = vpop.permute.xlu0 %1325
  %1327 = vrot.lane.b32.xlu0 %v1296, 122
  %v1328 = vpop.permute.xlu0 %1327
  %v1333 = vmul.f32 %v1277, %v1322
  %v1334 = vmul.f32 %v1278, %v1324
  %v1335 = vmul.f32 %v1279, %v1326
  %v1336 = vmul.f32 %v1280, %v1328
  %v1337 = vsub.f32 %v1221, %v358
  %v1338 = vsub.f32 %v1222, %v358
  %v1339 = vsub.f32 %v1223, %v358
  %v1340 = vsub.f32 %v1224, %v358
  %1342 = vset.pattern.permute.xlu0 6
  %1343 = vperm.xlu0 %1342, %v1337
  %v1344 = vpop.permute.xlu0 %1343
  %1347 = vset.pattern.permute.xlu0 6
  %1348 = vperm.xlu0 %1347, %v1338
  %v1349 = vpop.permute.xlu0 %1348
  %1352 = vset.pattern.permute.xlu0 6
  %1353 = vperm.xlu0 %1352, %v1339
  %v1354 = vpop.permute.xlu0 %1353
  %1357 = vset.pattern.permute.xlu0 6
  %1358 = vperm.xlu0 %1357, %v1340
  %v1359 = vpop.permute.xlu0 %1358
  %v1361 = vlaneseq
  %v1362 = vshrl.u32 %v1361, 7
  %v1363 = vsub.s32 6, %v1362
  %v1364 = vrot.slane %v1317, %v1363
  %v1365 = vlaneseq
  %v1366 = vshrl.u32 %v1365, 7
  %v1367 = vsub.s32 6, %v1366
  %v1368 = vrot.slane %v1318, %v1367
  %v1369 = vlaneseq
  %v1370 = vshrl.u32 %v1369, 7
  %v1371 = vsub.s32 6, %v1370
  %v1372 = vrot.slane %v1319, %v1371
  %v1373 = vlaneseq
  %v1374 = vshrl.u32 %v1373, 7
  %v1375 = vsub.s32 6, %v1374
  %v1376 = vrot.slane %v1320, %v1375
  %v1377 = vmul.f32 %v1344, %v1364
  %v1378 = vmul.f32 %v1349, %v1368
  %v1379 = vmul.f32 %v1354, %v1372
  %v1380 = vmul.f32 %v1359, %v1376
  %v1381 = vsub.f32 %v1221, %v1377
  %v1382 = vsub.f32 %v1222, %v1378
  %v1383 = vsub.f32 %v1223, %v1379
  %v1384 = vsub.f32 %v1224, %v1380
  %v1385 = vlaneseq
  %v1386 = vshrl.u32 %v1385, 7
  %v1387 = vsub.s32 6, %v1386
  %v1388 = vrot.slane %v1333, %v1387
  %v1389 = vlaneseq
  %v1390 = vshrl.u32 %v1389, 7
  %v1391 = vsub.s32 6, %v1390
  %v1392 = vrot.slane %v1334, %v1391
  %v1393 = vlaneseq
  %v1394 = vshrl.u32 %v1393, 7
  %v1395 = vsub.s32 6, %v1394
  %v1396 = vrot.slane %v1335, %v1395
  %v1397 = vlaneseq
  %v1398 = vshrl.u32 %v1397, 7
  %v1399 = vsub.s32 6, %v1398
  %v1400 = vrot.slane %v1336, %v1399
  %1405 = vrot.lane.b32.xlu0 %v1388, 6
  %v1406 = vpop.permute.xlu0 %1405
  %1407 = vrot.lane.b32.xlu0 %v1392, 6
  %v1408 = vpop.permute.xlu0 %1407
  %1409 = vrot.lane.b32.xlu0 %v1396, 6
  %v1410 = vpop.permute.xlu0 %1409
  %1411 = vrot.lane.b32.xlu0 %v1400, 6
  %v1412 = vpop.permute.xlu0 %1411
  %v1417 = vmul.f32 %v1337, %v1406
  %v1418 = vmul.f32 %v1338, %v1408
  %v1419 = vmul.f32 %v1339, %v1410
  %v1420 = vmul.f32 %v1340, %v1412
  %1425 = vrot.lane.b32.xlu0 %v1417, 122
  %v1426 = vpop.permute.xlu0 %1425
  %1427 = vrot.lane.b32.xlu0 %v1418, 122
  %v1428 = vpop.permute.xlu0 %1427
  %1429 = vrot.lane.b32.xlu0 %v1419, 122
  %v1430 = vpop.permute.xlu0 %1429
  %1431 = vrot.lane.b32.xlu0 %v1420, 122
  %v1432 = vpop.permute.xlu0 %1431
  %v1437 = vsub.f32 %v1277, %v1426
  %v1438 = vsub.f32 %v1278, %v1428
  %v1439 = vsub.f32 %v1279, %v1430
  %v1440 = vsub.f32 %v1280, %v1432
  %v1441 = vrcp.pop %v1381
  %v1442 = vrcp.pop %v1382
  %v1443 = vrcp.pop %v1383
  %v1444 = vrcp.pop %v1384
  %v1445 = vmul.f32 %v1381, %v1441
  %v1446 = vmul.f32 %v1382, %v1442
  %v1447 = vmul.f32 %v1383, %v1443
  %v1448 = vmul.f32 %v1384, %v1444
  %v1449 = vsub.f32 2.0, %v1445
  %v1450 = vsub.f32 2.0, %v1446
  %v1451 = vsub.f32 2.0, %v1447
  %v1452 = vsub.f32 2.0, %v1448
  %v1453 = vmul.f32 %v1441, %v1449
  %v1454 = vmul.f32 %v1442, %v1450
  %v1455 = vmul.f32 %v1443, %v1451
  %v1456 = vmul.f32 %v1444, %v1452
  %1461 = vrot.lane.b32.xlu0 %v1453, 121
  %v1462 = vpop.permute.xlu0 %1461
  %1463 = vrot.lane.b32.xlu0 %v1454, 121
  %v1464 = vpop.permute.xlu0 %1463
  %1465 = vrot.lane.b32.xlu0 %v1455, 121
  %v1466 = vpop.permute.xlu0 %1465
  %1467 = vrot.lane.b32.xlu0 %v1456, 121
  %v1468 = vpop.permute.xlu0 %1467
  %v1473 = vmul.f32 %v1437, %v1462
  %v1474 = vmul.f32 %v1438, %v1464
  %v1475 = vmul.f32 %v1439, %v1466
  %v1476 = vmul.f32 %v1440, %v1468
  %v1477 = vsub.f32 %v1381, %v358
  %v1478 = vsub.f32 %v1382, %v358
  %v1479 = vsub.f32 %v1383, %v358
  %v1480 = vsub.f32 %v1384, %v358
  %v1481 = vlaneseq
  %v1482 = vshrl.u32 %v1481, 7
  %v1483 = vsub.s32 7, %v1482
  %v1484 = vrot.slane %v1473, %v1483
  %v1485 = vlaneseq
  %v1486 = vshrl.u32 %v1485, 7
  %v1487 = vsub.s32 7, %v1486
  %v1488 = vrot.slane %v1474, %v1487
  %v1489 = vlaneseq
  %v1490 = vshrl.u32 %v1489, 7
  %v1491 = vsub.s32 7, %v1490
  %v1492 = vrot.slane %v1475, %v1491
  %v1493 = vlaneseq
  %v1494 = vshrl.u32 %v1493, 7
  %v1495 = vsub.s32 7, %v1494
  %v1496 = vrot.slane %v1476, %v1495
  %1501 = vrot.lane.b32.xlu0 %v1484, 7
  %v1502 = vpop.permute.xlu0 %1501
  %1503 = vrot.lane.b32.xlu0 %v1488, 7
  %v1504 = vpop.permute.xlu0 %1503
  %1505 = vrot.lane.b32.xlu0 %v1492, 7
  %v1506 = vpop.permute.xlu0 %1505
  %1507 = vrot.lane.b32.xlu0 %v1496, 7
  %v1508 = vpop.permute.xlu0 %1507
  %v1513 = vmul.f32 %v1477, %v1502
  %v1514 = vmul.f32 %v1478, %v1504
  %v1515 = vmul.f32 %v1479, %v1506
  %v1516 = vmul.f32 %v1480, %v1508
  %1521 = vrot.lane.b32.xlu0 %v1513, 121
  %v1522 = vpop.permute.xlu0 %1521
  %1523 = vrot.lane.b32.xlu0 %v1514, 121
  %v1524 = vpop.permute.xlu0 %1523
  %1525 = vrot.lane.b32.xlu0 %v1515, 121
  %v1526 = vpop.permute.xlu0 %1525
  %1527 = vrot.lane.b32.xlu0 %v1516, 121
  %v1528 = vpop.permute.xlu0 %1527
  %v1533 = vsub.f32 %v1437, %v1522
  %v1534 = vsub.f32 %v1438, %v1524
  %v1535 = vsub.f32 %v1439, %v1526
  %v1536 = vsub.f32 %v1440, %v1528
  %1541 = vrot.lane.b32.xlu0 %v1533, 8
  %v1542 = vpop.permute.xlu0 %1541
  %1543 = vrot.lane.b32.xlu0 %v1534, 8
  %v1544 = vpop.permute.xlu0 %1543
  %1545 = vrot.lane.b32.xlu0 %v1535, 8
  %v1546 = vpop.permute.xlu0 %1545
  %1547 = vrot.lane.b32.xlu0 %v1536, 8
  %v1548 = vpop.permute.xlu0 %1547
  %v1553 = vmul.f32 %v105, %v1542
  %v1554 = vmul.f32 %v185, %v1544
  %v1555 = vmul.f32 %v265, %v1546
  %v1556 = vmul.f32 %v345, %v1548
  %vm1557 = vcmask 72768
  %v1558 = vsel %vm1557, %v1553, 0.0
  %v1559 = vrot.slane %v1558, 4
  %v1560 = vadd.f32 %v1558, %v1559
  %v1561 = vrot.slane %v1560, 2
  %v1562 = vadd.f32 %v1560, %v1561
  %v1563 = vrot.slane %v1562, 1
  %v1564 = vadd.f32 %v1562, %v1563
  %v1565 = vsel %vm1557, %v1554, 0.0
  %v1566 = vrot.slane %v1565, 4
  %v1567 = vadd.f32 %v1565, %v1566
  %v1568 = vrot.slane %v1567, 2
  %v1569 = vadd.f32 %v1567, %v1568
  %v1570 = vrot.slane %v1569, 1
  %v1571 = vadd.f32 %v1569, %v1570
  %v1572 = vsel %vm1557, %v1555, 0.0
  %v1573 = vrot.slane %v1572, 4
  %v1574 = vadd.f32 %v1572, %v1573
  %v1575 = vrot.slane %v1574, 2
  %v1576 = vadd.f32 %v1574, %v1575
  %v1577 = vrot.slane %v1576, 1
  %v1578 = vadd.f32 %v1576, %v1577
  %v1579 = vsel %vm1557, %v1556, 0.0
  %v1580 = vrot.slane %v1579, 4
  %v1581 = vadd.f32 %v1579, %v1580
  %v1582 = vrot.slane %v1581, 2
  %v1583 = vadd.f32 %v1581, %v1582
  %v1584 = vrot.slane %v1583, 1
  %v1585 = vadd.f32 %v1583, %v1584
  %v1586 = vld [vmem:[%s3] sm:$0x1]
  %v1587 = vld [vmem:[%s3 + $0x1] sm:$0x1]
  %v1588 = vld [vmem:[%s3 + $0x2] sm:$0x1]
  %v1589 = vld [vmem:[%s3 + $0x3] sm:$0x1]
  %v1594 = vlaneseq
  %v1595 = vshrl.u32 %v1594, 7
  %v1596 = vsub.s32 0, %v1595
  %v1597 = vrot.slane %v1586, %v1596
  %v1598 = vlaneseq
  %v1599 = vshrl.u32 %v1598, 7
  %v1600 = vsub.s32 0, %v1599
  %v1601 = vrot.slane %v1587, %v1600
  %v1602 = vlaneseq
  %v1603 = vshrl.u32 %v1602, 7
  %v1604 = vsub.s32 0, %v1603
  %v1605 = vrot.slane %v1588, %v1604
  %v1606 = vlaneseq
  %v1607 = vshrl.u32 %v1606, 7
  %v1608 = vsub.s32 0, %v1607
  %v1609 = vrot.slane %v1589, %v1608
  %1610 = vrot.lane.b32.xlu0 %v1597, 8
  %v1611 = vpop.permute.xlu0 %1610
  %1612 = vrot.lane.b32.xlu0 %v1601, 8
  %v1613 = vpop.permute.xlu0 %1612
  %1614 = vrot.lane.b32.xlu0 %v1605, 8
  %v1615 = vpop.permute.xlu0 %1614
  %1616 = vrot.lane.b32.xlu0 %v1609, 8
  %v1617 = vpop.permute.xlu0 %1616
  %v1622 = vmul.f32 %v1564, %v1611
  %v1623 = vmul.f32 %v1571, %v1613
  %v1624 = vmul.f32 %v1578, %v1615
  %v1625 = vmul.f32 %v1585, %v1617
  %1626 = vrot.lane.b32.xlu0 %v1597, 7
  %v1627 = vpop.permute.xlu0 %1626
  %1628 = vrot.lane.b32.xlu0 %v1601, 7
  %v1629 = vpop.permute.xlu0 %1628
  %1630 = vrot.lane.b32.xlu0 %v1605, 7
  %v1631 = vpop.permute.xlu0 %1630
  %1632 = vrot.lane.b32.xlu0 %v1609, 7
  %v1633 = vpop.permute.xlu0 %1632
  %v1638 = vadd.f32 %v1622, %v1627
  %v1639 = vadd.f32 %v1623, %v1629
  %v1640 = vadd.f32 %v1624, %v1631
  %v1641 = vadd.f32 %v1625, %v1633
  %1642 = vrot.lane.b32.xlu0 %v1597, 6
  %v1643 = vpop.permute.xlu0 %1642
  %1644 = vrot.lane.b32.xlu0 %v1601, 6
  %v1645 = vpop.permute.xlu0 %1644
  %1646 = vrot.lane.b32.xlu0 %v1605, 6
  %v1647 = vpop.permute.xlu0 %1646
  %1648 = vrot.lane.b32.xlu0 %v1609, 6
  %v1649 = vpop.permute.xlu0 %1648
  %v1654 = vadd.f32 %v1638, %v1643
  %v1655 = vadd.f32 %v1639, %v1645
  %v1656 = vadd.f32 %v1640, %v1647
  %v1657 = vadd.f32 %v1641, %v1649
  %1662 = vrot.lane.b32.xlu0 %v1654, 120
  %v1663 = vpop.permute.xlu0 %1662
  %1664 = vrot.lane.b32.xlu0 %v1655, 120
  %v1665 = vpop.permute.xlu0 %1664
  %1666 = vrot.lane.b32.xlu0 %v1656, 120
  %v1667 = vpop.permute.xlu0 %1666
  %1668 = vrot.lane.b32.xlu0 %v1657, 120
  %v1669 = vpop.permute.xlu0 %1668
  %vm1674 = vcmask 0
  %1675 = vst.msk [vmem:[%s4] sm:$0x1] %vm1674, %v1663
  %1676 = vst.msk [vmem:[%s4 + $0x1] sm:$0x1] %vm1674, %v1665
  %1677 = vst.msk [vmem:[%s4 + $0x2] sm:$0x1] %vm1674, %v1667
  %1678 = vst.msk [vmem:[%s4 + $0x3] sm:$0x1] %vm1674, %v1669
  // Predicated region
  $region18: #{resus_rr_forward.1} parent=0 // pred_check
    _
  $region19: #{resus_rr_forward.1} parent=0 // pred_check_branch
    %1680 = sbr.rel (0) target = $region21
  $region20: #{resus_rr_forward.1} parent=0 // pred_region
    _
  $region21: #{resus_rr_forward.1} parent=0 // pred_fallthru
    _
  // Predicated region
  $region22: #{resus_rr_forward.1} parent=0 // pred_check
    _
  $region23: #{resus_rr_forward.1} parent=0 // pred_check_branch
    %1682 = sbr.rel (0) target = $region25
  $region24: #{resus_rr_forward.1} parent=0 // pred_region
    _
  $region25: #{resus_rr_forward.1} parent=0 // pred_fallthru
    _

</llo_original>
